<compile_context>
chip_gen: v6e
topology: v6e:2x2x1
jax: 0.10.0
libtpu: 0.0.40
codegen_flags: <defaults>
</compile_context>

<pallas_src>
import functools

import jax
import jax.numpy as jnp
import numpy as np
from jax import lax
from jax.experimental import pallas as pl
from jax.experimental.pallas import tpu as pltpu


def _round_up(x, m):
    return ((x + m - 1) // m) * m


def _qag_kernel(data_ref, centers_ref, csub_ref, out_ref,
                acc_ref, cnt_ref, col0_ref, *, radius, nsample, n_valid):
    # data_ref    : (1, R1, NT)   rows: [x, y, z, feat_0..feat_{C-1}, ones]
    # centers_ref : (1, TP, 3)    query centers of this P tile
    # csub_ref    : (1, R, TP)    rows 0..2 = center coords (lane-dense in P), rest 0
    # out_ref     : (1, R, S, TP) output tile (lane-dense in P)
    # acc_ref     : (R1, S*TP) f32 scratch  -- gather accumulator, last row = found flag
    # cnt_ref     : (TP, 1)  i32 scratch    -- in-ball count of previous chunks
    # col0_ref    : (R1, 1)  f32 scratch    -- point-0 data (empty-ball fallback)
    c = pl.program_id(2)
    nc = pl.num_programs(2)

    R1 = data_ref.shape[1]
    NT = data_ref.shape[2]
    TP = centers_ref.shape[1]
    R = out_ref.shape[1]
    S = nsample
    r2 = jnp.float32(radius) * jnp.float32(radius)

    data = data_ref[0]           # (R1, NT)
    centers = centers_ref[0]     # (TP, 3)

    @pl.when(c == 0)
    def _init():
        acc_ref[...] = jnp.zeros_like(acc_ref)
        cnt_ref[...] = jnp.zeros_like(cnt_ref)
        col0_ref[...] = data[:, 0:1]          # chunk 0 contains point 0

    # ---- exact squared distances (VPU only, no transposes) ----
    d2 = jnp.zeros((TP, NT), jnp.float32)
    for k in range(3):
        diff = centers[:, k:k + 1] - data[k:k + 1, :]     # (TP,1)-(1,NT) -> (TP,NT)
        d2 = d2 + diff * diff

    col = lax.broadcasted_iota(jnp.int32, (TP, NT), 1) + c * NT
    mask = (d2 < r2) & (col < n_valid)                    # padded columns excluded
    mask_f = mask.astype(jnp.float32)

    # ---- in-ball rank = inclusive prefix count along N (exact bf16 MXU matmul) ----
    row_i = lax.broadcasted_iota(jnp.int32, (NT, NT), 0)
    col_j = lax.broadcasted_iota(jnp.int32, (NT, NT), 1)
    tri = (row_i <= col_j).astype(jnp.float32).astype(jnp.bfloat16)   # (NT, NT)
    rank_local = lax.dot_general(
        mask_f.astype(jnp.bfloat16), tri, (((1,), (0,)), ((), ())),
        preferred_element_type=jnp.float32).astype(jnp.int32)         # (TP, NT)
    rank = rank_local + cnt_ref[...]                                  # global rank
    cnt_ref[...] = cnt_ref[...] + jnp.sum(
        mask_f, axis=-1, keepdims=True).astype(jnp.int32)

    # ---- batched one-hot gather: ONE (R1,NT) x (S*TP,NT)^T matmul per chunk ----
    blocks = [(mask & (rank == (s + 1))).astype(jnp.float32) for s in range(S)]
    onehot = jnp.concatenate(blocks, axis=0)                          # (S*TP, NT)
    acc_ref[...] = acc_ref[...] + lax.dot_general(
        data, onehot, (((1,), (1,)), ((), ())),
        preferred_element_type=jnp.float32)                           # (R1, S*TP)

    @pl.when(c == nc - 1)
    def _finalize():
        csub = csub_ref[0]                      # (R, TP) center rows (0 for features)
        fb = col0_ref[0:R, :]                   # (R, 1) point-0 fallback (empty ball)
        g0 = acc_ref[0:R, 0:TP]                 # slot-0 gathered values
        f0 = acc_ref[R1 - 1:R1, 0:TP] > 0.5     # slot-0 found flag (1,TP)
        base0 = jnp.where(f0, g0, fb)           # first in-ball point (or point 0)
        out_ref[0, :, 0, :] = (base0 - csub).astype(out_ref.dtype)
        for s in range(1, S):
            lo = s * TP
            gs = acc_ref[0:R, lo:lo + TP]
            fs = acc_ref[R1 - 1:R1, lo:lo + TP] > 0.5
            out_ref[0, :, s, :] = (jnp.where(fs, gs, base0) - csub).astype(out_ref.dtype)


def query_and_group(xyz, new_xyz, features=None, *, radius, nsample, use_xyz=True):
    """Pallas implementation of QueryAndGroup.forward (ball query + grouping)."""
    B, N, _ = xyz.shape
    _, P, _ = new_xyz.shape
    S = int(nsample)

    xyz = xyz.astype(jnp.float32)
    new_xyz = new_xyz.astype(jnp.float32)

    xyz_t = jnp.transpose(xyz, (0, 2, 1))                              # (B, 3, N)
    if features is not None:
        data = jnp.concatenate([xyz_t, features.astype(jnp.float32)], axis=1)
    else:
        assert use_xyz, "Cannot have no features and not use xyz as a feature!"
        data = xyz_t
    R = data.shape[1]                                                   # 3 + C
    # Extra row of ones -> per-slot "found" indicator comes out of the gather matmul.
    data = jnp.concatenate([data, jnp.ones((B, 1, N), jnp.float32)], axis=1)
    R1 = R + 1

    # ---- padding / tiling: lane-dense 128-wide P tiles, 128/256/512-wide N chunks ----
    TP = 128
    P_pad = _round_up(P, TP)
    N_pad = _round_up(N, 128)
    if N_pad % 512 == 0:
        NT = 512
    elif N_pad % 256 == 0:
        NT = 256
    else:
        NT = 128

    if N_pad != N:
        data = jnp.pad(data, ((0, 0), (0, 0), (0, N_pad - N)))
    new_xyz_p = jnp.pad(new_xyz, ((0, 0), (0, P_pad - P), (0, 0))) if P_pad != P else new_xyz

    # Center-subtraction slab: rows 0..2 = centers (lane-dense in P), rest zeros.
    new_xyz_t = jnp.transpose(new_xyz_p, (0, 2, 1))                    # (B, 3, P_pad)
    if R > 3:
        csub = jnp.concatenate(
            [new_xyz_t, jnp.zeros((B, R - 3, P_pad), jnp.float32)], axis=1)
    else:
        csub = new_xyz_t                                               # (B, R, P_pad)

    n_ptiles = P_pad // TP
    n_chunks = N_pad // NT

    kernel = functools.partial(_qag_kernel, radius=float(radius), nsample=S,
                               n_valid=N)

    # VMEM budget computed from actual buffer sizes (kept <= ~40 MiB for v7x headroom).
    est = (2 * R1 * NT * 4 + 2 * TP * 128 * 4 + 2 * R * TP * 4
           + 2 * R * S * TP * 4 + R1 * S * TP * 4
           + S * TP * NT * 4 + 10 * TP * NT * 4 + 2 * NT * NT * 4)
    vmem_limit = int(min(max(2 * est, 16 * 1024 * 1024), 40 * 1024 * 1024))

    out_t = pl.pallas_call(
        kernel,
        out_shape=jax.ShapeDtypeStruct((B, R, S, P_pad), jnp.float32),
        grid_spec=pltpu.PrefetchScalarGridSpec(
            num_scalar_prefetch=0,
            grid=(B, n_ptiles, n_chunks),
            in_specs=[
                pl.BlockSpec((1, R1, NT), lambda b, p, n: (b, 0, n)),   # data chunk
                pl.BlockSpec((1, TP, 3), lambda b, p, n: (b, p, 0)),    # centers
                pl.BlockSpec((1, R, TP), lambda b, p, n: (b, 0, p)),    # center rows
            ],
            out_specs=pl.BlockSpec((1, R, S, TP), lambda b, p, n: (b, 0, 0, p)),
            scratch_shapes=[
                pltpu.VMEM((R1, S * TP), jnp.float32),   # gather accumulator
                pltpu.VMEM((TP, 1), jnp.int32),          # running in-ball count
                pltpu.VMEM((R1, 1), jnp.float32),        # point-0 fallback
            ]),
        compiler_params=pltpu.CompilerParams(
            dimension_semantics=("parallel", "parallel", "arbitrary"),
            vmem_limit_bytes=vmem_limit),
    )(data, new_xyz_p, csub)

    # TODO(synk): fuse this (S,P) transpose into the consumer to save an HBM pass.
    out = jnp.transpose(out_t, (0, 1, 3, 2))[:, :, :P, :]              # (B, R, P, S)

    if features is not None and not use_xyz:
        # TODO(synk): for use_xyz=False, drop the xyz rows from the gather slab
        # (keep a small separate 3-row slab for the distance pass) to skip this waste.
        out = out[:, 3:, :, :]
    return out


# ---------------- vectorized NumPy reference (matches CUDA ball_query) ----------------
def _reference(xyz, new_xyz, features, radius, nsample, use_xyz=True):
    xyz = np.asarray(xyz)
    new_xyz = np.asarray(new_xyz)
    feats = None if features is None else np.asarray(features)
    B, N, _ = xyz.shape
    _, P, _ = new_xyz.shape
    C = 0 if feats is None else feats.shape[1]
    r2 = np.float32(radius) * np.float32(radius)
    out = np.zeros((B, 3 + C, P, nsample), dtype=np.float32)
    for b in range(B):
        for p in range(P):
            center = new_xyz[b, p]
            d2 = np.sum((xyz[b] - center[None, :]) ** 2, axis=1)
            inball = np.nonzero(d2 < r2)[0]
            if inball.size == 0:
                idx = np.zeros((nsample,), dtype=np.int64)
            else:
                take = inball[:nsample]
                idx = np.concatenate(
                    [take, np.full((nsample - take.size,), take[0], dtype=np.int64)])
            out[b, 0:3, p, :] = xyz[b, idx, :].T - center[:, None]
            if feats is not None:
                out[b, 3:, p, :] = feats[b][:, idx]
    if feats is not None and not use_xyz:
        return out[:, 3:, :, :]
    return out


if __name__ == "__main__":
    key = jax.random.PRNGKey(0)
    k1, k2, k3, k4, k5 = jax.random.split(key, 5)

    # Coordinates on a 1/32 grid and a radius^2 placed mid-lattice keep every
    # squared distance strictly away from the ball boundary, so the mask is
    # bit-identical between TPU and the NumPy reference (FMA-proof).

    # --- small smoke test (doc-sized shapes) ---
    B, N, P, C, S = 2, 16, 8, 4, 4
    radius = float(np.sqrt((256 + 0.5) / 1024.0))          # ~0.5005
    xyz = jnp.floor(jax.random.uniform(k1, (B, N, 3), dtype=jnp.float32) * 32.0) / 32.0
    new_xyz = xyz[:, :P, :]
    # push one query center far away to exercise the empty-ball fallback
    new_xyz = new_xyz.at[0, 0, :].set(jnp.array([10.0, 10.0, 10.0], jnp.float32))
    features = jax.random.normal(k2, (B, C, N), dtype=jnp.float32)

    out = query_and_group(xyz, new_xyz, features, radius=radius, nsample=S)
    out = jax.block_until_ready(out)
    assert out.shape == (B, 3 + C, P, S)
    ref = _reference(xyz, new_xyz, features, radius, S)
    np.testing.assert_allclose(np.asarray(out), ref, rtol=1e-5, atol=1e-5)

    # --- second config: exercises P padding, multiple P tiles and multiple N chunks ---
    B2, N2, P2, C2, S2 = 1, 300, 200, 5, 6
    radius2 = float(np.sqrt((65 + 0.5) / 1024.0))          # ~0.253
    xyz2 = jnp.floor(jax.random.uniform(k3, (B2, N2, 3), dtype=jnp.float32) * 32.0) / 32.0
    new_xyz2 = jnp.floor(
        jax.random.uniform(k4, (B2, P2, 3), dtype=jnp.float32) * 32.0) / 32.0
    features2 = jax.random.normal(k5, (B2, C2, N2), dtype=jnp.float32)

    out2 = query_and_group(xyz2, new_xyz2, features2, radius=radius2, nsample=S2)
    out2 = jax.block_until_ready(out2)
    ref2 = _reference(xyz2, new_xyz2, features2, radius2, S2)
    np.testing.assert_allclose(np.asarray(out2), ref2, rtol=1e-5, atol=1e-5)

    print("KERNEL_OK")
</pallas_src>

<mosaic_0001>
module attributes {stable_mosaic.version = 11 : i64} {
  func.func @_qag_kernel(%arg0: i32, %arg1: i32, %arg2: i32, %arg3: memref<1x8x128xf32, #tpu.memory_space<vmem>>, %arg4: memref<1x128x3xf32, #tpu.memory_space<vmem>>, %arg5: memref<1x7x128xf32, #tpu.memory_space<vmem>>, %arg6: memref<1x7x4x128xf32, #tpu.memory_space<vmem>>, %arg7: memref<8x512xf32, #tpu.memory_space<vmem>>, %arg8: memref<128x1xi32, #tpu.memory_space<vmem>>, %arg9: memref<8x1xf32, #tpu.memory_space<vmem>>) attributes {dimension_semantics = [#tpu.dimension_semantics<parallel>, #tpu.dimension_semantics<parallel>, #tpu.dimension_semantics<arbitrary>], iteration_bounds = array<i64: 2, 1, 1>, scalar_prefetch = 0 : i64, scratch_operands = 3 : i64, tpu.core_type = #tpu.core_type<tc>, window_params = [{transform_indices = @transform_0, window_bounds = array<i64: 1, 8, 128>}, {transform_indices = @transform_1, window_bounds = array<i64: 1, 128, 3>}, {transform_indices = @transform_2, window_bounds = array<i64: 1, 7, 128>}, {transform_indices = @transform_3, window_bounds = array<i64: 1, 7, 4, 128>}]} {
    %cst = arith.constant 0.500488043 : f32
    %cst_0 = arith.constant 0.500488043 : f32
    %0 = arith.mulf %cst, %cst_0 : f32
    %c0 = arith.constant 0 : index
    %c0_1 = arith.constant 0 : index
    %c0_2 = arith.constant 0 : index
    %1 = vector.load %arg3[%c0, %c0_1, %c0_2] : memref<1x8x128xf32, #tpu.memory_space<vmem>>, vector<1x8x128xf32>
    %2 = vector.shape_cast %1 : vector<1x8x128xf32> to vector<8x128xf32>
    %c0_3 = arith.constant 0 : index
    %c0_4 = arith.constant 0 : index
    %c0_5 = arith.constant 0 : index
    %3 = vector.load %arg4[%c0_3, %c0_4, %c0_5] : memref<1x128x3xf32, #tpu.memory_space<vmem>>, vector<1x128x3xf32>
    %4 = vector.shape_cast %3 : vector<1x128x3xf32> to vector<128x3xf32>
    %c0_i32 = arith.constant 0 : i32
    %5 = arith.cmpi eq, %arg2, %c0_i32 : i32
    %6 = arith.extui %5 : i1 to i32
    %c0_i32_6 = arith.constant 0 : i32
    %7 = arith.cmpi ne, %6, %c0_i32_6 : i32
    scf.if %7 {
      %cst_23 = arith.constant 0.000000e+00 : f32
      %87 = vector.broadcast %cst_23 : f32 to vector<8x512xf32>
      %c0_24 = arith.constant 0 : index
      %c0_25 = arith.constant 0 : index
      %88 = vector.load %arg7[%c0_24, %c0_25] : memref<8x512xf32, #tpu.memory_space<vmem>>, vector<8x512xf32>
      tpu.vector_store %arg7[%c0_24, %c0_25], %87 {strides = array<i32>} : memref<8x512xf32, #tpu.memory_space<vmem>>, vector<8x512xf32>,
      %c0_i32_26 = arith.constant 0 : i32
      %89 = vector.broadcast %c0_i32_26 : i32 to vector<128x1xi32>
      %c0_27 = arith.constant 0 : index
      %c0_28 = arith.constant 0 : index
      %90 = vector.load %arg8[%c0_27, %c0_28] : memref<128x1xi32, #tpu.memory_space<vmem>>, vector<128x1xi32>
      tpu.vector_store %arg8[%c0_27, %c0_28], %89 {strides = array<i32>} : memref<128x1xi32, #tpu.memory_space<vmem>>, vector<128x1xi32>,
      %91 = vector.extract_strided_slice %2 {offsets = [0, 0], sizes = [8, 1], strides = [1, 1]} : vector<8x128xf32> to vector<8x1xf32>
      %c0_29 = arith.constant 0 : index
      %c0_30 = arith.constant 0 : index
      %92 = vector.load %arg9[%c0_29, %c0_30] : memref<8x1xf32, #tpu.memory_space<vmem>>, vector<8x1xf32>
      tpu.vector_store %arg9[%c0_29, %c0_30], %91 {strides = array<i32>} : memref<8x1xf32, #tpu.memory_space<vmem>>, vector<8x1xf32>,
    } else {
    }
    %cst_7 = arith.constant 0.000000e+00 : f32
    %8 = vector.broadcast %cst_7 : f32 to vector<128x128xf32>
    %9 = vector.extract_strided_slice %4 {offsets = [0, 0], sizes = [128, 1], strides = [1, 1]} : vector<128x3xf32> to vector<128x1xf32>
    %10 = vector.extract_strided_slice %2 {offsets = [0, 0], sizes = [1, 128], strides = [1, 1]} : vector<8x128xf32> to vector<1x128xf32>
    %11 = vector.broadcast %9 : vector<128x1xf32> to vector<128x128xf32>
    %12 = vector.broadcast %10 : vector<1x128xf32> to vector<128x128xf32>
    %13 = arith.subf %11, %12 : vector<128x128xf32>
    %14 = arith.mulf %13, %13 : vector<128x128xf32>
    %15 = arith.addf %8, %14 : vector<128x128xf32>
    %16 = vector.extract_strided_slice %4 {offsets = [0, 1], sizes = [128, 1], strides = [1, 1]} : vector<128x3xf32> to vector<128x1xf32>
    %17 = vector.extract_strided_slice %2 {offsets = [1, 0], sizes = [1, 128], strides = [1, 1]} : vector<8x128xf32> to vector<1x128xf32>
    %18 = vector.broadcast %16 : vector<128x1xf32> to vector<128x128xf32>
    %19 = vector.broadcast %17 : vector<1x128xf32> to vector<128x128xf32>
    %20 = arith.subf %18, %19 : vector<128x128xf32>
    %21 = arith.mulf %20, %20 : vector<128x128xf32>
    %22 = arith.addf %15, %21 : vector<128x128xf32>
    %23 = vector.extract_strided_slice %4 {offsets = [0, 2], sizes = [128, 1], strides = [1, 1]} : vector<128x3xf32> to vector<128x1xf32>
    %24 = vector.extract_strided_slice %2 {offsets = [2, 0], sizes = [1, 128], strides = [1, 1]} : vector<8x128xf32> to vector<1x128xf32>
    %25 = vector.broadcast %23 : vector<128x1xf32> to vector<128x128xf32>
    %26 = vector.broadcast %24 : vector<1x128xf32> to vector<128x128xf32>
    %27 = arith.subf %25, %26 : vector<128x128xf32>
    %28 = arith.mulf %27, %27 : vector<128x128xf32>
    %29 = arith.addf %22, %28 : vector<128x128xf32>
    %30 = tpu.iota {dimensions = array<i32: 1>} : vector<128x128xi32>
    %c128_i32 = arith.constant 128 : i32
    %31 = arith.muli %arg2, %c128_i32 : i32
    %32 = vector.broadcast %31 : i32 to vector<128x128xi32>
    %33 = arith.addi %30, %32 : vector<128x128xi32>
    %34 = vector.broadcast %0 : f32 to vector<128x128xf32>
    %35 = arith.cmpf olt, %29, %34 : vector<128x128xf32>
    %c16_i32 = arith.constant 16 : i32
    %36 = vector.broadcast %c16_i32 : i32 to vector<128x128xi32>
    %37 = arith.cmpi slt, %33, %36 : vector<128x128xi32>
    %38 = arith.andi %35, %37 : vector<128x128xi1>
    %39 = arith.extui %38 : vector<128x128xi1> to vector<128x128xi32>
    %40 = arith.sitofp %39 : vector<128x128xi32> to vector<128x128xf32>
    %41 = tpu.iota {dimensions = array<i32: 0>} : vector<128x128xi32>
    %42 = tpu.iota {dimensions = array<i32: 1>} : vector<128x128xi32>
    %43 = arith.cmpi sle, %41, %42 : vector<128x128xi32>
    %44 = arith.extui %43 : vector<128x128xi1> to vector<128x128xi32>
    %45 = arith.sitofp %44 : vector<128x128xi32> to vector<128x128xf32>
    %46 = arith.truncf %45 : vector<128x128xf32> to vector<128x128xbf16>
    %47 = arith.truncf %40 : vector<128x128xf32> to vector<128x128xbf16>
    %cst_8 = arith.constant dense<0.000000e+00> : vector<128x128xf32>
    %48 = tpu.matmul %47, %46, %cst_8 {dimension_numbers = #tpu.dot_dimension_numbers<[1], [0], [0], [1], [0, 0, 1, 1], [], []>} : vector<128x128xbf16>, vector<128x128xbf16>, vector<128x128xf32> -> vector<128x128xf32>
    %49 = arith.fptosi %48 : vector<128x128xf32> to vector<128x128xi32>
    %c0_9 = arith.constant 0 : index
    %c0_10 = arith.constant 0 : index
    %50 = vector.load %arg8[%c0_9, %c0_10] : memref<128x1xi32, #tpu.memory_space<vmem>>, vector<128x1xi32>
    %51 = vector.broadcast %50 : vector<128x1xi32> to vector<128x128xi32>
    %52 = arith.addi %49, %51 : vector<128x128xi32>
    %c0_11 = arith.constant 0 : index
    %c0_12 = arith.constant 0 : index
    %53 = vector.load %arg8[%c0_11, %c0_12] : memref<128x1xi32, #tpu.memory_space<vmem>>, vector<128x1xi32>
    %cst_13 = arith.constant dense<0.000000e+00> : vector<128xf32>
    %54 = vector.multi_reduction <add>, %40, %cst_13 [1] : vector<128x128xf32> to vector<128xf32>
    %55 = vector.shape_cast %54 : vector<128xf32> to vector<128x1xf32>
    %56 = arith.fptosi %55 : vector<128x1xf32> to vector<128x1xi32>
    %57 = arith.addi %53, %56 : vector<128x1xi32>
    %c0_14 = arith.constant 0 : index
    %c0_15 = arith.constant 0 : index
    %58 = vector.load %arg8[%c0_14, %c0_15] : memref<128x1xi32, #tpu.memory_space<vmem>>, vector<128x1xi32>
    tpu.vector_store %arg8[%c0_14, %c0_15], %57 {strides = array<i32>} : memref<128x1xi32, #tpu.memory_space<vmem>>, vector<128x1xi32>,
    %c1_i32 = arith.constant 1 : i32
    %59 = vector.broadcast %c1_i32 : i32 to vector<128x128xi32>
    %60 = arith.cmpi eq, %52, %59 : vector<128x128xi32>
    %61 = arith.andi %38, %60 : vector<128x128xi1>
    %62 = arith.extui %61 : vector<128x128xi1> to vector<128x128xi32>
    %63 = arith.sitofp %62 : vector<128x128xi32> to vector<128x128xf32>
    %c2_i32 = arith.constant 2 : i32
    %64 = vector.broadcast %c2_i32 : i32 to vector<128x128xi32>
    %65 = arith.cmpi eq, %52, %64 : vector<128x128xi32>
    %66 = arith.andi %38, %65 : vector<128x128xi1>
    %67 = arith.extui %66 : vector<128x128xi1> to vector<128x128xi32>
    %68 = arith.sitofp %67 : vector<128x128xi32> to vector<128x128xf32>
    %c3_i32 = arith.constant 3 : i32
    %69 = vector.broadcast %c3_i32 : i32 to vector<128x128xi32>
    %70 = arith.cmpi eq, %52, %69 : vector<128x128xi32>
    %71 = arith.andi %38, %70 : vector<128x128xi1>
    %72 = arith.extui %71 : vector<128x128xi1> to vector<128x128xi32>
    %73 = arith.sitofp %72 : vector<128x128xi32> to vector<128x128xf32>
    %c4_i32 = arith.constant 4 : i32
    %74 = vector.broadcast %c4_i32 : i32 to vector<128x128xi32>
    %75 = arith.cmpi eq, %52, %74 : vector<128x128xi32>
    %76 = arith.andi %38, %75 : vector<128x128xi1>
    %77 = arith.extui %76 : vector<128x128xi1> to vector<128x128xi32>
    %78 = arith.sitofp %77 : vector<128x128xi32> to vector<128x128xf32>
    %79 = tpu.concatenate %63, %68, %73, %78 in 0 : vector<128x128xf32>, vector<128x128xf32>, vector<128x128xf32>, vector<128x128xf32> -> vector<512x128xf32>
    %c0_16 = arith.constant 0 : index
    %c0_17 = arith.constant 0 : index
    %80 = vector.load %arg7[%c0_16, %c0_17] : memref<8x512xf32, #tpu.memory_space<vmem>>, vector<8x512xf32>
    %cst_18 = arith.constant dense<0.000000e+00> : vector<8x512xf32>
    %81 = tpu.matmul %2, %79, %cst_18 {dimension_numbers = #tpu.dot_dimension_numbers<[1], [1], [0], [0], [0, 0, 1, 0], [], []>} : vector<8x128xf32>, vector<512x128xf32>, vector<8x512xf32> -> vector<8x512xf32>
    %82 = arith.addf %80, %81 : vector<8x512xf32>
    %c0_19 = arith.constant 0 : index
    %c0_20 = arith.constant 0 : index
    %83 = vector.load %arg7[%c0_19, %c0_20] : memref<8x512xf32, #tpu.memory_space<vmem>>, vector<8x512xf32>
    tpu.vector_store %arg7[%c0_19, %c0_20], %82 {strides = array<i32>} : memref<8x512xf32, #tpu.memory_space<vmem>>, vector<8x512xf32>,
    %c0_i32_21 = arith.constant 0 : i32
    %84 = arith.cmpi eq, %arg2, %c0_i32_21 : i32
    %85 = arith.extui %84 : i1 to i32
    %c0_i32_22 = arith.constant 0 : i32
    %86 = arith.cmpi ne, %85, %c0_i32_22 : i32
    scf.if %86 {
      %c0_23 = arith.constant 0 : index
      %c0_24 = arith.constant 0 : index
      %c0_25 = arith.constant 0 : index
      %87 = vector.load %arg5[%c0_23, %c0_24, %c0_25] : memref<1x7x128xf32, #tpu.memory_space<vmem>>, vector<1x7x128xf32>
      %88 = vector.shape_cast %87 : vector<1x7x128xf32> to vector<7x128xf32>
      %c0_26 = arith.constant 0 : index
      %c0_27 = arith.constant 0 : index
      %89 = vector.load %arg9[%c0_26, %c0_27] : memref<8x1xf32, #tpu.memory_space<vmem>>, vector<7x1xf32>
      %c0_28 = arith.constant 0 : index
      %c0_29 = arith.constant 0 : index
      %90 = vector.load %arg7[%c0_28, %c0_29] : memref<8x512xf32, #tpu.memory_space<vmem>>, vector<7x128xf32>
      %c7 = arith.constant 7 : index
      %c0_30 = arith.constant 0 : index
      %91 = vector.load %arg7[%c7, %c0_30] : memref<8x512xf32, #tpu.memory_space<vmem>>, vector<1x128xf32>
      %cst_31 = arith.constant 5.000000e-01 : f32
      %92 = vector.broadcast %cst_31 : f32 to vector<1x128xf32>
      %93 = arith.cmpf ogt, %91, %92 : vector<1x128xf32>
      %94 = vector.shape_cast %93 : vector<1x128xi1> to vector<1x128xi1>
      %95 = vector.broadcast %94 : vector<1x128xi1> to vector<7x128xi1>
      %96 = vector.shape_cast %89 : vector<7x1xf32> to vector<7x1xf32>
      %97 = vector.broadcast %96 : vector<7x1xf32> to vector<7x128xf32>
      %98 = arith.select %95, %90, %97 : vector<7x128xi1>, vector<7x128xf32>
      %99 = arith.subf %98, %88 : vector<7x128xf32>
      %c0_32 = arith.constant 0 : index
      %c0_33 = arith.constant 0 : index
      %c0_34 = arith.constant 0 : index
      %c0_35 = arith.constant 0 : index
      %100 = vector.load %arg6[%c0_32, %c0_33, %c0_34, %c0_35] : memref<1x7x4x128xf32, #tpu.memory_space<vmem>>, vector<1x7x1x128xf32>
      %101 = vector.shape_cast %100 : vector<1x7x1x128xf32> to vector<7x128xf32>
      %102 = vector.shape_cast %99 : vector<7x128xf32> to vector<1x7x1x128xf32>
      tpu.vector_store %arg6[%c0_32, %c0_33, %c0_34, %c0_35], %102 {strides = array<i32>} : memref<1x7x4x128xf32, #tpu.memory_space<vmem>>, vector<1x7x1x128xf32>,
      %c0_36 = arith.constant 0 : index
      %c128 = arith.constant 128 : index
      %103 = vector.load %arg7[%c0_36, %c128] : memref<8x512xf32, #tpu.memory_space<vmem>>, vector<7x128xf32>
      %c7_37 = arith.constant 7 : index
      %c128_38 = arith.constant 128 : index
      %104 = vector.load %arg7[%c7_37, %c128_38] : memref<8x512xf32, #tpu.memory_space<vmem>>, vector<1x128xf32>
      %cst_39 = arith.constant 5.000000e-01 : f32
      %105 = vector.broadcast %cst_39 : f32 to vector<1x128xf32>
      %106 = arith.cmpf ogt, %104, %105 : vector<1x128xf32>
      %107 = vector.shape_cast %106 : vector<1x128xi1> to vector<1x128xi1>
      %108 = vector.broadcast %107 : vector<1x128xi1> to vector<7x128xi1>
      %109 = arith.select %108, %103, %98 : vector<7x128xi1>, vector<7x128xf32>
      %110 = arith.subf %109, %88 : vector<7x128xf32>
      %c0_40 = arith.constant 0 : index
      %c0_41 = arith.constant 0 : index
      %c1 = arith.constant 1 : index
      %c0_42 = arith.constant 0 : index
      %111 = vector.load %arg6[%c0_40, %c0_41, %c1, %c0_42] : memref<1x7x4x128xf32, #tpu.memory_space<vmem>>, vector<1x7x1x128xf32>
      %112 = vector.shape_cast %111 : vector<1x7x1x128xf32> to vector<7x128xf32>
      %113 = vector.shape_cast %110 : vector<7x128xf32> to vector<1x7x1x128xf32>
      tpu.vector_store %arg6[%c0_40, %c0_41, %c1, %c0_42], %113 {strides = array<i32>} : memref<1x7x4x128xf32, #tpu.memory_space<vmem>>, vector<1x7x1x128xf32>,
      %c0_43 = arith.constant 0 : index
      %c256 = arith.constant 256 : index
      %114 = vector.load %arg7[%c0_43, %c256] : memref<8x512xf32, #tpu.memory_space<vmem>>, vector<7x128xf32>
      %c7_44 = arith.constant 7 : index
      %c256_45 = arith.constant 256 : index
      %115 = vector.load %arg7[%c7_44, %c256_45] : memref<8x512xf32, #tpu.memory_space<vmem>>, vector<1x128xf32>
      %cst_46 = arith.constant 5.000000e-01 : f32
      %116 = vector.broadcast %cst_46 : f32 to vector<1x128xf32>
      %117 = arith.cmpf ogt, %115, %116 : vector<1x128xf32>
      %118 = vector.shape_cast %117 : vector<1x128xi1> to vector<1x128xi1>
      %119 = vector.broadcast %118 : vector<1x128xi1> to vector<7x128xi1>
      %120 = arith.select %119, %114, %98 : vector<7x128xi1>, vector<7x128xf32>
      %121 = arith.subf %120, %88 : vector<7x128xf32>
      %c0_47 = arith.constant 0 : index
      %c0_48 = arith.constant 0 : index
      %c2 = arith.constant 2 : index
      %c0_49 = arith.constant 0 : index
      %122 = vector.load %arg6[%c0_47, %c0_48, %c2, %c0_49] : memref<1x7x4x128xf32, #tpu.memory_space<vmem>>, vector<1x7x1x128xf32>
      %123 = vector.shape_cast %122 : vector<1x7x1x128xf32> to vector<7x128xf32>
      %124 = vector.shape_cast %121 : vector<7x128xf32> to vector<1x7x1x128xf32>
      tpu.vector_store %arg6[%c0_47, %c0_48, %c2, %c0_49], %124 {strides = array<i32>} : memref<1x7x4x128xf32, #tpu.memory_space<vmem>>, vector<1x7x1x128xf32>,
      %c0_50 = arith.constant 0 : index
      %c384 = arith.constant 384 : index
      %125 = vector.load %arg7[%c0_50, %c384] : memref<8x512xf32, #tpu.memory_space<vmem>>, vector<7x128xf32>
      %c7_51 = arith.constant 7 : index
      %c384_52 = arith.constant 384 : index
      %126 = vector.load %arg7[%c7_51, %c384_52] : memref<8x512xf32, #tpu.memory_space<vmem>>, vector<1x128xf32>
      %cst_53 = arith.constant 5.000000e-01 : f32
      %127 = vector.broadcast %cst_53 : f32 to vector<1x128xf32>
      %128 = arith.cmpf ogt, %126, %127 : vector<1x128xf32>
      %129 = vector.shape_cast %128 : vector<1x128xi1> to vector<1x128xi1>
      %130 = vector.broadcast %129 : vector<1x128xi1> to vector<7x128xi1>
      %131 = arith.select %130, %125, %98 : vector<7x128xi1>, vector<7x128xf32>
      %132 = arith.subf %131, %88 : vector<7x128xf32>
      %c0_54 = arith.constant 0 : index
      %c0_55 = arith.constant 0 : index
      %c3 = arith.constant 3 : index
      %c0_56 = arith.constant 0 : index
      %133 = vector.load %arg6[%c0_54, %c0_55, %c3, %c0_56] : memref<1x7x4x128xf32, #tpu.memory_space<vmem>>, vector<1x7x1x128xf32>
      %134 = vector.shape_cast %133 : vector<1x7x1x128xf32> to vector<7x128xf32>
      %135 = vector.shape_cast %132 : vector<7x128xf32> to vector<1x7x1x128xf32>
      tpu.vector_store %arg6[%c0_54, %c0_55, %c3, %c0_56], %135 {strides = array<i32>} : memref<1x7x4x128xf32, #tpu.memory_space<vmem>>, vector<1x7x1x128xf32>,
    } else {
    }
    return
  }
  func.func @transform_0(%arg0: i32, %arg1: i32, %arg2: i32) -> (i32, i32, i32) {
    %c0_i32 = arith.constant 0 : i32
    %c0_i32_0 = arith.constant 0 : i32
    return %arg0, %c0_i32, %arg2 : i32, i32, i32
  }
  func.func @transform_1(%arg0: i32, %arg1: i32, %arg2: i32) -> (i32, i32, i32) {
    %c0_i32 = arith.constant 0 : i32
    %c0_i32_0 = arith.constant 0 : i32
    return %arg0, %arg1, %c0_i32 : i32, i32, i32
  }
  func.func @transform_2(%arg0: i32, %arg1: i32, %arg2: i32) -> (i32, i32, i32) {
    %c0_i32 = arith.constant 0 : i32
    %c0_i32_0 = arith.constant 0 : i32
    return %arg0, %c0_i32, %arg1 : i32, i32, i32
  }
  func.func @transform_3(%arg0: i32, %arg1: i32, %arg2: i32) -> (i32, i32, i32, i32) {
    %c0_i32 = arith.constant 0 : i32
    %c0_i32_0 = arith.constant 0 : i32
    %c0_i32_1 = arith.constant 0 : i32
    return %arg0, %c0_i32, %c0_i32_0, %arg1 : i32, i32, i32, i32
  }
}

</mosaic_0001>

<llo_original>
// kernel: tpu_custom_call.1
$region0: #{tpu_custom_call.1}
  #allocation0 [shape = 'u32[]', space=smem, size = 0x4, offset = 0x4, fixed_abs, tag = 'smem constant byte address 0x4 - core index']
  #allocation1 [shape = 'u32[144,128]{1,0:T(1,128)}', space=vmem, size = 0x12000, scoped, tag = 'internal scratch']
  #allocation2 [shape = 'f32[8,512]{1,0:T(8,128)}', space=vmem, size = 0x4000, scoped, tag = 'scratch operand']
  #allocation3 [shape = 's32[128,1]{1,0:T(8,128)}', space=vmem, size = 0x10000, scoped, tag = 'scratch operand']
  #allocation4 [shape = 'f32[8,1]{1,0:T(8,128)}', space=vmem, size = 0x1000, scoped, tag = 'scratch operand']
  %s0 = inlined_call_operand.vmem [shape: f32[2,8,128], index: 0, kind: input, shape index: {}]
  %s1 = inlined_call_operand.vmem [shape: f32[2,128,3], index: 1, kind: input, shape index: {}]
  %s2 = inlined_call_operand.vmem [shape: f32[2,7,128], index: 2, kind: input, shape index: {}]
  %s3 = inlined_call_operand.hbm [shape: f32[2,7,4,128], index: 3, kind: output, shape index: {}]
  %s4 = sld [smem:[#allocation0]]
  $region53: #{tpu_custom_call.1} parent=0
    _
  %s6 = ssub.s32 1, %s4
  %s7 = scalar_select 0, %s6, %s4
  $region1: #{tpu_custom_call.1} parent=0
    #allocation5 [shape = 'u8[28672]{0}', space=vmem, size = 0x7000, scoped, tag = 'output window, operand 0']
    #allocation6 [shape = 's32[2]{0}', space=sflag, size = 0x8, scoped, tag = 'scoped memory for tpu_custom_call.1']
    %8 = vsyncpa [#allocation6], 0
    %s9 = scalar_lea.sflag [#allocation6], 1
    %10 = vsyncpa %s9, 0
    loop: start=0, step=1, limit=4
    $region2: #{tpu_custom_call.1} parent=1 // loop_pre_header
      _
    $region3: #{tpu_custom_call.1} parent=1 // loop_header
      %s12 = sphi 0, %s16
      %p13 = scmp.ge.s32.totalorder %s12, 4
      %s19 = sphi 0, %s38
      %s20 = sphi 0, %s34
      %s21 = sphi 0, %s30
      %s22 = sphi 0, %s19
      %s23 = sphi 0, %s20
      %s24 = sphi 0, %s21
      %s25 = sphi 0, %s22
      %s26 = sphi 0, %s23
      %s27 = sphi 0, %s24
      %s43 = sphi 0, %s45
      %s46 = sphi 0, %s43
      %s47 = sphi 0, %s46
      %s63 = sphi 0, %s47
      %s71 = sphi 0, %s73
      %s74 = sphi 0, %s71
      %s75 = sphi 0, %s74
      %s91 = sphi 0, %s75
      %s99 = sphi 0, %s101
      %s102 = sphi 0, %s99
      %s103 = sphi 0, %s102
      %s119 = sphi 0, %s103
      %s127 = sphi 0, %s129
      %s130 = sphi 0, %s127
      %s131 = sphi 0, %s130
      %s147 = sphi 0, %s131
    $region4: #{tpu_custom_call.1} parent=1 // loop_header_branch
      %15 = sbr.rel (%p13) target = $region8
    $region5: #{tpu_custom_call.1} parent=1 // loop_body
      %s17 = ssub.s32 %s12, 1
      %s18 = ssub.s32 %s12, 2
      %s28 = sadd.s32 1, %s21
      %p29 = scmp.ge.s32.totalorder %s28, 1
      %s30 = scalar_select %p29, 0, %s28
      %s31 = sadd.s32 1, %s20
      %s32 = scalar_select %p29, %s31, %s20
      %p33 = scmp.ge.s32.totalorder %s32, 1
      %s34 = scalar_select %p33, 0, %s32
      %s35 = sadd.s32 1, %s19
      %s36 = scalar_select %p33, %s35, %s19
      %p37 = scmp.ge.s32.totalorder %s36, 2
      %s38 = scalar_select %p37, 0, %s36
      %s39 = ssub.s32 %s19, %s38
      %s40 = ssub.s32 %s21, %s30
      %s41 = sor.u32 %s39, %s40
      %p42 = scmp.eq.s32.totalorder %s41, 0
      %s44 = sadd.s32 %s43, 1
      %s45 = scalar_select %p42, %s43, %s44
      %p48 = pneg %p42
      %p49 = scmp.eq.s32.totalorder %s12, 1
      %p50 = por %p48, %p49
      %p51 = scmp.ne.s32.totalorder %s43, %s46
      %p52 = scmp.eq.s32.totalorder %s12, 0
      %p53 = por %p51, %p52
      %p54 = scmp.ne.s32.totalorder %s43, %s46
      %p55 = scmp.eq.s32.totalorder %s17, 1
      %p56 = por %p54, %p55
      %p57 = scmp.ne.s32.totalorder %s46, %s47
      %p58 = scmp.eq.s32.totalorder %s17, 0
      %p59 = por %p57, %p58
      %p60 = scmp.ne.s32.totalorder %s46, %s47
      %p61 = scmp.eq.s32.totalorder %s18, 1
      %p62 = por %p60, %p61
      %p64 = scmp.ne.s32.totalorder %s47, %s63
      %p65 = scmp.eq.s32.totalorder %s18, 0
      %p66 = por %p64, %p65
      %s67 = ssub.s32 %s19, %s38
      %s68 = ssub.s32 %s20, %s34
      %s69 = sor.u32 %s67, %s68
      %p70 = scmp.eq.s32.totalorder %s69, 0
      %s72 = sadd.s32 %s71, 1
      %s73 = scalar_select %p70, %s71, %s72
      %p76 = pneg %p70
      %p77 = scmp.eq.s32.totalorder %s12, 1
      %p78 = por %p76, %p77
      %p79 = scmp.ne.s32.totalorder %s71, %s74
      %p80 = scmp.eq.s32.totalorder %s12, 0
      %p81 = por %p79, %p80
      %p82 = scmp.ne.s32.totalorder %s71, %s74
      %p83 = scmp.eq.s32.totalorder %s17, 1
      %p84 = por %p82, %p83
      %p85 = scmp.ne.s32.totalorder %s74, %s75
      %p86 = scmp.eq.s32.totalorder %s17, 0
      %p87 = por %p85, %p86
      %p88 = scmp.ne.s32.totalorder %s74, %s75
      %p89 = scmp.eq.s32.totalorder %s18, 1
      %p90 = por %p88, %p89
      %p92 = scmp.ne.s32.totalorder %s75, %s91
      %p93 = scmp.eq.s32.totalorder %s18, 0
      %p94 = por %p92, %p93
      %s95 = ssub.s32 %s19, %s38
      %s96 = ssub.s32 %s20, %s34
      %s97 = sor.u32 %s95, %s96
      %p98 = scmp.eq.s32.totalorder %s97, 0
      %s100 = sadd.s32 %s99, 1
      %s101 = scalar_select %p98, %s99, %s100
      %p104 = pneg %p98
      %p105 = scmp.eq.s32.totalorder %s12, 1
      %p106 = por %p104, %p105
      %p107 = scmp.ne.s32.totalorder %s99, %s102
      %p108 = scmp.eq.s32.totalorder %s12, 0
      %p109 = por %p107, %p108
      %p110 = scmp.ne.s32.totalorder %s99, %s102
      %p111 = scmp.eq.s32.totalorder %s17, 1
      %p112 = por %p110, %p111
      %p113 = scmp.ne.s32.totalorder %s102, %s103
      %p114 = scmp.eq.s32.totalorder %s17, 0
      %p115 = por %p113, %p114
      %p116 = scmp.ne.s32.totalorder %s102, %s103
      %p117 = scmp.eq.s32.totalorder %s18, 1
      %p118 = por %p116, %p117
      %p120 = scmp.ne.s32.totalorder %s103, %s119
      %p121 = scmp.eq.s32.totalorder %s18, 0
      %p122 = por %p120, %p121
      %s123 = ssub.s32 %s19, %s38
      %s124 = ssub.s32 %s20, %s34
      %s125 = sor.u32 %s123, %s124
      %p126 = scmp.eq.s32.totalorder %s125, 0
      %s128 = sadd.s32 %s127, 1
      %s129 = scalar_select %p126, %s127, %s128
      %p132 = pneg %p126
      %p133 = scmp.eq.s32.totalorder %s12, 1
      %p134 = por %p132, %p133
      %p135 = scmp.ne.s32.totalorder %s127, %s130
      %p136 = scmp.eq.s32.totalorder %s12, 0
      %p137 = por %p135, %p136
      %p138 = scmp.ne.s32.totalorder %s127, %s130
      %p139 = scmp.eq.s32.totalorder %s17, 1
      %p140 = por %p138, %p139
      %p141 = scmp.ne.s32.totalorder %s130, %s131
      %p142 = scmp.eq.s32.totalorder %s17, 0
      %p143 = por %p141, %p142
      %p144 = scmp.ne.s32.totalorder %s130, %s131
      %p145 = scmp.eq.s32.totalorder %s18, 1
      %p146 = por %p144, %p145
      %p148 = scmp.ne.s32.totalorder %s131, %s147
      %p149 = scmp.eq.s32.totalorder %s18, 0
      %p150 = por %p148, %p149
      %p151 = scmp.le.s32.totalorder 1, %s12
      %p152 = scmp.lt.s32.totalorder %s12, 3
      %p153 = pnand %p151, %p152
      %p154 = pneg %p153
      // Predicated region
      $region9: #{tpu_custom_call.1} parent=5 // pred_check
        _
      $region10: #{tpu_custom_call.1} parent=5 // pred_check_branch
        %156 = sbr.rel (%p153) target = $region12
      $region11: #{tpu_custom_call.1} parent=5 // pred_region
        %s157 = ssub.s32 %s12, 1
      $region12: #{tpu_custom_call.1} parent=5 // pred_fallthru
        _
      %p158 = scmp.lt.s32.totalorder %s12, 2
      // Predicated region
      $region13: #{tpu_custom_call.1} parent=5 // pred_check
        %p159 = pneg %p158
      $region14: #{tpu_custom_call.1} parent=5 // pred_check_branch
        %161 = sbr.rel (%p159) target = $region16
      $region15: #{tpu_custom_call.1} parent=5 // pred_region
        // Predicated region
        $region17: #{tpu_custom_call.1} parent=15 // pred_check
          %p162 = pneg %p53
        $region18: #{tpu_custom_call.1} parent=15 // pred_check_branch
          %164 = sbr.rel (%p162) target = $region20
        $region19: #{tpu_custom_call.1} parent=15 // pred_region
          %p165 = scmp.lt.s32.totalorder %s19, 1
          %s166 = scalar_select %p165, %s19, 1
          %p167 = scmp.lt.s32.totalorder %s21, 0
          %s168 = scalar_select %p167, %s21, 0
          %s169 = sadd.s32 %s168, %s166
          %s170 = smul.addr %s169, 8
          %s171 = scalar_lea.vmem %s0, %s170
        $region20: #{tpu_custom_call.1} parent=15 // pred_fallthru
          _
        // Predicated region
        $region21: #{tpu_custom_call.1} parent=15 // pred_check
          %p172 = pneg %p81
        $region22: #{tpu_custom_call.1} parent=15 // pred_check_branch
          %174 = sbr.rel (%p172) target = $region24
        $region23: #{tpu_custom_call.1} parent=15 // pred_region
          %s175 = smul.u32 16, %s20
          %p176 = scmp.lt.s32.totalorder %s19, 1
          %s177 = scalar_select %p176, %s19, 1
          %p178 = scmp.lt.s32.totalorder %s175, 15
          %s179 = scalar_select %p178, %s175, 15
          %s180 = smul.addr %s177, 16
          %s181 = sadd.s32 %s179, %s180
          %s182 = smul.addr %s181, 8
          %s183 = scalar_lea.vmem %s1, %s182
          %s184 = smul.u32 16, %s20
        $region24: #{tpu_custom_call.1} parent=15 // pred_fallthru
          _
        // Predicated region
        $region25: #{tpu_custom_call.1} parent=15 // pred_check
          %p185 = pneg %p109
        $region26: #{tpu_custom_call.1} parent=15 // pred_check_branch
          %187 = sbr.rel (%p185) target = $region28
        $region27: #{tpu_custom_call.1} parent=15 // pred_region
          %p188 = scmp.lt.s32.totalorder %s19, 1
          %s189 = scalar_select %p188, %s19, 1
          %p190 = scmp.lt.s32.totalorder %s20, 0
          %s191 = scalar_select %p190, %s20, 0
          %s192 = sadd.s32 %s191, %s189
          %s193 = smul.addr %s192, 8
          %s194 = scalar_lea.vmem %s2, %s193
        $region28: #{tpu_custom_call.1} parent=15 // pred_fallthru
          _
      $region16: #{tpu_custom_call.1} parent=5 // pred_fallthru
        _
      %p195 = scmp.le.s32.totalorder 1, %s12
      %p196 = scmp.lt.s32.totalorder %s12, 3
      %p197 = pnand %p195, %p196
      %p198 = pneg %p197
      // Predicated region
      $region29: #{tpu_custom_call.1} parent=5 // pred_check
        _
      $region30: #{tpu_custom_call.1} parent=5 // pred_check_branch
        %200 = sbr.rel (%p197) target = $region32
      $region31: #{tpu_custom_call.1} parent=5 // pred_region
        %s201 = ssub.s32 %s12, 1
        %p202 = scmp.lt.s32.totalorder %s22, 1
        %s203 = scalar_select %p202, %s22, 1
        %p204 = scmp.lt.s32.totalorder %s24, 0
        %s205 = scalar_select %p204, %s24, 0
        %s206 = sadd.s32 %s205, %s203
        %s207 = smul.addr %s206, 8
        %s208 = scalar_lea.vmem %s0, %s207
        %p209 = pneg %p59
        %p210 = pneg %p56
        %s211 = smul.u32 16, %s23
        %p212 = scmp.lt.s32.totalorder %s22, 1
        %s213 = scalar_select %p212, %s22, 1
        %p214 = scmp.lt.s32.totalorder %s211, 15
        %s215 = scalar_select %p214, %s211, 15
        %s216 = smul.addr %s213, 16
        %s217 = sadd.s32 %s215, %s216
        %s218 = smul.addr %s217, 8
        %s219 = scalar_lea.vmem %s1, %s218
        %p220 = pneg %p87
        %p221 = pneg %p84
        %p222 = scmp.lt.s32.totalorder %s22, 1
        %s223 = scalar_select %p222, %s22, 1
        %p224 = scmp.lt.s32.totalorder %s23, 0
        %s225 = scalar_select %p224, %s23, 0
        %s226 = sadd.s32 %s225, %s223
        %s227 = smul.addr %s226, 8
        %s228 = scalar_lea.vmem %s2, %s227
        %p229 = pneg %p115
        %p230 = pneg %p112
        %p231 = pneg %p143
        %p232 = pneg %p140
        %s233 = sand.u32 %s130, 1
        %s234 = scalar_lea.sflag [#allocation6], %s233
        %s235 = sand.u32 %s130, 1
        %s236 = smul.addr %s235, 28
        %s237 = scalar_lea.vmem [#allocation5], %s236
        %p238 = scmp.lt.s32.totalorder %s22, 1
        %s239 = scalar_select %p238, %s22, 1
        %p240 = scmp.lt.s32.totalorder %s24, 0
        %s241 = scalar_select %p240, %s24, 0
        %s242 = sadd.s32 %s241, %s239
        %s243 = smul.addr %s242, 8
        %s244 = scalar_lea.vmem %s0, %s243
        %s245 = smul.u32 16, %s23
        %p246 = scmp.lt.s32.totalorder %s22, 1
        %s247 = scalar_select %p246, %s22, 1
        %p248 = scmp.lt.s32.totalorder %s245, 15
        %s249 = scalar_select %p248, %s245, 15
        %s250 = smul.addr %s247, 16
        %s251 = sadd.s32 %s249, %s250
        %s252 = smul.addr %s251, 8
        %s253 = scalar_lea.vmem %s1, %s252
        %s254 = smul.u32 16, %s23
        %p255 = scmp.lt.s32.totalorder %s22, 1
        %s256 = scalar_select %p255, %s22, 1
        %p257 = scmp.lt.s32.totalorder %s23, 0
        %s258 = scalar_select %p257, %s23, 0
        %s259 = sadd.s32 %s258, %s256
        %s260 = smul.addr %s259, 8
        %s261 = scalar_lea.vmem %s2, %s260
        %v263 = vld [vmem:[%s244] sm:$0xff]
        %v264 = vld [vmem:[%s253] sm:$0xff]
        %v265 = vld [vmem:[%s253 + $0x8] sm:$0xff]
        %v266 = vld [vmem:[%s253 + $0x10] sm:$0xff]
        %v267 = vld [vmem:[%s253 + $0x18] sm:$0xff]
        %v268 = vld [vmem:[%s253 + $0x20] sm:$0xff]
        %v269 = vld [vmem:[%s253 + $0x28] sm:$0xff]
        %v270 = vld [vmem:[%s253 + $0x30] sm:$0xff]
        %v271 = vld [vmem:[%s253 + $0x38] sm:$0xff]
        %v272 = vld [vmem:[%s253 + $0x40] sm:$0xff]
        %v273 = vld [vmem:[%s253 + $0x48] sm:$0xff]
        %v274 = vld [vmem:[%s253 + $0x50] sm:$0xff]
        %v275 = vld [vmem:[%s253 + $0x58] sm:$0xff]
        %v276 = vld [vmem:[%s253 + $0x60] sm:$0xff]
        %v277 = vld [vmem:[%s253 + $0x68] sm:$0xff]
        %v278 = vld [vmem:[%s253 + $0x70] sm:$0xff]
        %v279 = vld [vmem:[%s253 + $0x78] sm:$0xff]
        %p280 = scmp.eq.s32.totalorder %s24, 0
        // Predicated region
        $region33: #{tpu_custom_call.1} parent=31 // pred_check
          %p281 = pneg %p280
        $region34: #{tpu_custom_call.1} parent=31 // pred_check_branch
          %283 = sbr.rel (%p281) target = $region36
        $region35: #{tpu_custom_call.1} parent=31 // pred_region
          %284 = vst [vmem:[#allocation2] sm:$0xff] 0.0
          %285 = vst [vmem:[#allocation2 + $0x8] sm:$0xff] 0.0
          %286 = vst [vmem:[#allocation2 + $0x10] sm:$0xff] 0.0
          %287 = vst [vmem:[#allocation2 + $0x18] sm:$0xff] 0.0
          %vm288 = vcmask 7168
          %289 = vst.msk [vmem:[#allocation3] sm:$0xff] %vm288, 0
          %290 = vst.msk [vmem:[#allocation3 + $0x8] sm:$0xff] %vm288, 0
          %291 = vst.msk [vmem:[#allocation3 + $0x10] sm:$0xff] %vm288, 0
          %292 = vst.msk [vmem:[#allocation3 + $0x18] sm:$0xff] %vm288, 0
          %293 = vst.msk [vmem:[#allocation3 + $0x20] sm:$0xff] %vm288, 0
          %294 = vst.msk [vmem:[#allocation3 + $0x28] sm:$0xff] %vm288, 0
          %295 = vst.msk [vmem:[#allocation3 + $0x30] sm:$0xff] %vm288, 0
          %296 = vst.msk [vmem:[#allocation3 + $0x38] sm:$0xff] %vm288, 0
          %297 = vst.msk [vmem:[#allocation3 + $0x40] sm:$0xff] %vm288, 0
          %298 = vst.msk [vmem:[#allocation3 + $0x48] sm:$0xff] %vm288, 0
          %299 = vst.msk [vmem:[#allocation3 + $0x50] sm:$0xff] %vm288, 0
          %300 = vst.msk [vmem:[#allocation3 + $0x58] sm:$0xff] %vm288, 0
          %301 = vst.msk [vmem:[#allocation3 + $0x60] sm:$0xff] %vm288, 0
          %302 = vst.msk [vmem:[#allocation3 + $0x68] sm:$0xff] %vm288, 0
          %303 = vst.msk [vmem:[#allocation3 + $0x70] sm:$0xff] %vm288, 0
          %304 = vst.msk [vmem:[#allocation3 + $0x78] sm:$0xff] %vm288, 0
          %305 = vst.msk [vmem:[#allocation4] sm:$0xff] %vm288, %v263
        $region36: #{tpu_custom_call.1} parent=31 // pred_fallthru
          _
        %307 = vset.pattern.permute.xlu0 0
        %308 = vperm.xlu0 %307, %v264
        %v309 = vpop.permute.xlu0 %308
        %312 = vset.pattern.permute.xlu0 0
        %313 = vperm.xlu0 %312, %v265
        %v314 = vpop.permute.xlu0 %313
        %317 = vset.pattern.permute.xlu0 0
        %318 = vperm.xlu0 %317, %v266
        %v319 = vpop.permute.xlu0 %318
        %322 = vset.pattern.permute.xlu0 0
        %323 = vperm.xlu0 %322, %v267
        %v324 = vpop.permute.xlu0 %323
        %327 = vset.pattern.permute.xlu0 0
        %328 = vperm.xlu0 %327, %v268
        %v329 = vpop.permute.xlu0 %328
        %332 = vset.pattern.permute.xlu0 0
        %333 = vperm.xlu0 %332, %v269
        %v334 = vpop.permute.xlu0 %333
        %337 = vset.pattern.permute.xlu0 0
        %338 = vperm.xlu0 %337, %v270
        %v339 = vpop.permute.xlu0 %338
        %342 = vset.pattern.permute.xlu0 0
        %343 = vperm.xlu0 %342, %v271
        %v344 = vpop.permute.xlu0 %343
        %347 = vset.pattern.permute.xlu0 0
        %348 = vperm.xlu0 %347, %v272
        %v349 = vpop.permute.xlu0 %348
        %352 = vset.pattern.permute.xlu0 0
        %353 = vperm.xlu0 %352, %v273
        %v354 = vpop.permute.xlu0 %353
        %357 = vset.pattern.permute.xlu0 0
        %358 = vperm.xlu0 %357, %v274
        %v359 = vpop.permute.xlu0 %358
        %362 = vset.pattern.permute.xlu0 0
        %363 = vperm.xlu0 %362, %v275
        %v364 = vpop.permute.xlu0 %363
        %367 = vset.pattern.permute.xlu0 0
        %368 = vperm.xlu0 %367, %v276
        %v369 = vpop.permute.xlu0 %368
        %372 = vset.pattern.permute.xlu0 0
        %373 = vperm.xlu0 %372, %v277
        %v374 = vpop.permute.xlu0 %373
        %377 = vset.pattern.permute.xlu0 0
        %378 = vperm.xlu0 %377, %v278
        %v379 = vpop.permute.xlu0 %378
        %382 = vset.pattern.permute.xlu0 0
        %383 = vperm.xlu0 %382, %v279
        %v384 = vpop.permute.xlu0 %383
        %v386 = vlaneseq
        %v387 = vshrl.u32 %v386, 7
        %v388 = vsub.s32 0, %v387
        %v389 = vrot.slane %v263, %v388
        %v390 = vsub.f32 %v309, %v389
        %v391 = vsub.f32 %v314, %v389
        %v392 = vsub.f32 %v319, %v389
        %v393 = vsub.f32 %v324, %v389
        %v394 = vsub.f32 %v329, %v389
        %v395 = vsub.f32 %v334, %v389
        %v396 = vsub.f32 %v339, %v389
        %v397 = vsub.f32 %v344, %v389
        %v398 = vsub.f32 %v349, %v389
        %v399 = vsub.f32 %v354, %v389
        %v400 = vsub.f32 %v359, %v389
        %v401 = vsub.f32 %v364, %v389
        %v402 = vsub.f32 %v369, %v389
        %v403 = vsub.f32 %v374, %v389
        %v404 = vsub.f32 %v379, %v389
        %v405 = vsub.f32 %v384, %v389
        %v406 = vmul.f32 %v390, %v390
        %v407 = vmul.f32 %v391, %v391
        %v408 = vmul.f32 %v392, %v392
        %v409 = vmul.f32 %v393, %v393
        %v410 = vmul.f32 %v394, %v394
        %v411 = vmul.f32 %v395, %v395
        %v412 = vmul.f32 %v396, %v396
        %v413 = vmul.f32 %v397, %v397
        %v414 = vmul.f32 %v398, %v398
        %v415 = vmul.f32 %v399, %v399
        %v416 = vmul.f32 %v400, %v400
        %v417 = vmul.f32 %v401, %v401
        %v418 = vmul.f32 %v402, %v402
        %v419 = vmul.f32 %v403, %v403
        %v420 = vmul.f32 %v404, %v404
        %v421 = vmul.f32 %v405, %v405
        %v422 = vadd.f32 %v406, 0.0
        %v423 = vadd.f32 %v407, 0.0
        %v424 = vadd.f32 %v408, 0.0
        %v425 = vadd.f32 %v409, 0.0
        %v426 = vadd.f32 %v410, 0.0
        %v427 = vadd.f32 %v411, 0.0
        %v428 = vadd.f32 %v412, 0.0
        %v429 = vadd.f32 %v413, 0.0
        %v430 = vadd.f32 %v414, 0.0
        %v431 = vadd.f32 %v415, 0.0
        %v432 = vadd.f32 %v416, 0.0
        %v433 = vadd.f32 %v417, 0.0
        %v434 = vadd.f32 %v418, 0.0
        %v435 = vadd.f32 %v419, 0.0
        %v436 = vadd.f32 %v420, 0.0
        %v437 = vadd.f32 %v421, 0.0
        %438 = vset.pattern.permute.xlu0 1
        %439 = vperm.xlu0 %438, %v264
        %v440 = vpop.permute.xlu0 %439
        %442 = vset.pattern.permute.xlu0 1
        %443 = vperm.xlu0 %442, %v265
        %v444 = vpop.permute.xlu0 %443
        %446 = vset.pattern.permute.xlu0 1
        %447 = vperm.xlu0 %446, %v266
        %v448 = vpop.permute.xlu0 %447
        %450 = vset.pattern.permute.xlu0 1
        %451 = vperm.xlu0 %450, %v267
        %v452 = vpop.permute.xlu0 %451
        %454 = vset.pattern.permute.xlu0 1
        %455 = vperm.xlu0 %454, %v268
        %v456 = vpop.permute.xlu0 %455
        %458 = vset.pattern.permute.xlu0 1
        %459 = vperm.xlu0 %458, %v269
        %v460 = vpop.permute.xlu0 %459
        %462 = vset.pattern.permute.xlu0 1
        %463 = vperm.xlu0 %462, %v270
        %v464 = vpop.permute.xlu0 %463
        %466 = vset.pattern.permute.xlu0 1
        %467 = vperm.xlu0 %466, %v271
        %v468 = vpop.permute.xlu0 %467
        %470 = vset.pattern.permute.xlu0 1
        %471 = vperm.xlu0 %470, %v272
        %v472 = vpop.permute.xlu0 %471
        %474 = vset.pattern.permute.xlu0 1
        %475 = vperm.xlu0 %474, %v273
        %v476 = vpop.permute.xlu0 %475
        %478 = vset.pattern.permute.xlu0 1
        %479 = vperm.xlu0 %478, %v274
        %v480 = vpop.permute.xlu0 %479
        %482 = vset.pattern.permute.xlu0 1
        %483 = vperm.xlu0 %482, %v275
        %v484 = vpop.permute.xlu0 %483
        %486 = vset.pattern.permute.xlu0 1
        %487 = vperm.xlu0 %486, %v276
        %v488 = vpop.permute.xlu0 %487
        %490 = vset.pattern.permute.xlu0 1
        %491 = vperm.xlu0 %490, %v277
        %v492 = vpop.permute.xlu0 %491
        %494 = vset.pattern.permute.xlu0 1
        %495 = vperm.xlu0 %494, %v278
        %v496 = vpop.permute.xlu0 %495
        %498 = vset.pattern.permute.xlu0 1
        %499 = vperm.xlu0 %498, %v279
        %v500 = vpop.permute.xlu0 %499
        %v502 = vlaneseq
        %v503 = vshrl.u32 %v502, 7
        %v504 = vsub.s32 1, %v503
        %v505 = vrot.slane %v263, %v504
        %v506 = vsub.f32 %v440, %v505
        %v507 = vsub.f32 %v444, %v505
        %v508 = vsub.f32 %v448, %v505
        %v509 = vsub.f32 %v452, %v505
        %v510 = vsub.f32 %v456, %v505
        %v511 = vsub.f32 %v460, %v505
        %v512 = vsub.f32 %v464, %v505
        %v513 = vsub.f32 %v468, %v505
        %v514 = vsub.f32 %v472, %v505
        %v515 = vsub.f32 %v476, %v505
        %v516 = vsub.f32 %v480, %v505
        %v517 = vsub.f32 %v484, %v505
        %v518 = vsub.f32 %v488, %v505
        %v519 = vsub.f32 %v492, %v505
        %v520 = vsub.f32 %v496, %v505
        %v521 = vsub.f32 %v500, %v505
        %v522 = vmul.f32 %v506, %v506
        %v523 = vmul.f32 %v507, %v507
        %v524 = vmul.f32 %v508, %v508
        %v525 = vmul.f32 %v509, %v509
        %v526 = vmul.f32 %v510, %v510
        %v527 = vmul.f32 %v511, %v511
        %v528 = vmul.f32 %v512, %v512
        %v529 = vmul.f32 %v513, %v513
        %v530 = vmul.f32 %v514, %v514
        %v531 = vmul.f32 %v515, %v515
        %v532 = vmul.f32 %v516, %v516
        %v533 = vmul.f32 %v517, %v517
        %v534 = vmul.f32 %v518, %v518
        %v535 = vmul.f32 %v519, %v519
        %v536 = vmul.f32 %v520, %v520
        %v537 = vmul.f32 %v521, %v521
        %v538 = vadd.f32 %v422, %v522
        %v539 = vadd.f32 %v423, %v523
        %v540 = vadd.f32 %v424, %v524
        %v541 = vadd.f32 %v425, %v525
        %v542 = vadd.f32 %v426, %v526
        %v543 = vadd.f32 %v427, %v527
        %v544 = vadd.f32 %v428, %v528
        %v545 = vadd.f32 %v429, %v529
        %v546 = vadd.f32 %v430, %v530
        %v547 = vadd.f32 %v431, %v531
        %v548 = vadd.f32 %v432, %v532
        %v549 = vadd.f32 %v433, %v533
        %v550 = vadd.f32 %v434, %v534
        %v551 = vadd.f32 %v435, %v535
        %v552 = vadd.f32 %v436, %v536
        %v553 = vadd.f32 %v437, %v537
        %554 = vset.pattern.permute.xlu0 2
        %555 = vperm.xlu0 %554, %v264
        %v556 = vpop.permute.xlu0 %555
        %558 = vset.pattern.permute.xlu0 2
        %559 = vperm.xlu0 %558, %v265
        %v560 = vpop.permute.xlu0 %559
        %562 = vset.pattern.permute.xlu0 2
        %563 = vperm.xlu0 %562, %v266
        %v564 = vpop.permute.xlu0 %563
        %566 = vset.pattern.permute.xlu0 2
        %567 = vperm.xlu0 %566, %v267
        %v568 = vpop.permute.xlu0 %567
        %570 = vset.pattern.permute.xlu0 2
        %571 = vperm.xlu0 %570, %v268
        %v572 = vpop.permute.xlu0 %571
        %574 = vset.pattern.permute.xlu0 2
        %575 = vperm.xlu0 %574, %v269
        %v576 = vpop.permute.xlu0 %575
        %578 = vset.pattern.permute.xlu0 2
        %579 = vperm.xlu0 %578, %v270
        %v580 = vpop.permute.xlu0 %579
        %582 = vset.pattern.permute.xlu0 2
        %583 = vperm.xlu0 %582, %v271
        %v584 = vpop.permute.xlu0 %583
        %586 = vset.pattern.permute.xlu0 2
        %587 = vperm.xlu0 %586, %v272
        %v588 = vpop.permute.xlu0 %587
        %590 = vset.pattern.permute.xlu0 2
        %591 = vperm.xlu0 %590, %v273
        %v592 = vpop.permute.xlu0 %591
        %594 = vset.pattern.permute.xlu0 2
        %595 = vperm.xlu0 %594, %v274
        %v596 = vpop.permute.xlu0 %595
        %598 = vset.pattern.permute.xlu0 2
        %599 = vperm.xlu0 %598, %v275
        %v600 = vpop.permute.xlu0 %599
        %602 = vset.pattern.permute.xlu0 2
        %603 = vperm.xlu0 %602, %v276
        %v604 = vpop.permute.xlu0 %603
        %606 = vset.pattern.permute.xlu0 2
        %607 = vperm.xlu0 %606, %v277
        %v608 = vpop.permute.xlu0 %607
        %610 = vset.pattern.permute.xlu0 2
        %611 = vperm.xlu0 %610, %v278
        %v612 = vpop.permute.xlu0 %611
        %614 = vset.pattern.permute.xlu0 2
        %615 = vperm.xlu0 %614, %v279
        %v616 = vpop.permute.xlu0 %615
        %v618 = vlaneseq
        %v619 = vshrl.u32 %v618, 7
        %v620 = vsub.s32 2, %v619
        %v621 = vrot.slane %v263, %v620
        %v622 = vsub.f32 %v556, %v621
        %v623 = vsub.f32 %v560, %v621
        %v624 = vsub.f32 %v564, %v621
        %v625 = vsub.f32 %v568, %v621
        %v626 = vsub.f32 %v572, %v621
        %v627 = vsub.f32 %v576, %v621
        %v628 = vsub.f32 %v580, %v621
        %v629 = vsub.f32 %v584, %v621
        %v630 = vsub.f32 %v588, %v621
        %v631 = vsub.f32 %v592, %v621
        %v632 = vsub.f32 %v596, %v621
        %v633 = vsub.f32 %v600, %v621
        %v634 = vsub.f32 %v604, %v621
        %v635 = vsub.f32 %v608, %v621
        %v636 = vsub.f32 %v612, %v621
        %v637 = vsub.f32 %v616, %v621
        %v638 = vmul.f32 %v622, %v622
        %v639 = vmul.f32 %v623, %v623
        %v640 = vmul.f32 %v624, %v624
        %v641 = vmul.f32 %v625, %v625
        %v642 = vmul.f32 %v626, %v626
        %v643 = vmul.f32 %v627, %v627
        %v644 = vmul.f32 %v628, %v628
        %v645 = vmul.f32 %v629, %v629
        %v646 = vmul.f32 %v630, %v630
        %v647 = vmul.f32 %v631, %v631
        %v648 = vmul.f32 %v632, %v632
        %v649 = vmul.f32 %v633, %v633
        %v650 = vmul.f32 %v634, %v634
        %v651 = vmul.f32 %v635, %v635
        %v652 = vmul.f32 %v636, %v636
        %v653 = vmul.f32 %v637, %v637
        %v654 = vadd.f32 %v538, %v638
        %v655 = vadd.f32 %v539, %v639
        %v656 = vadd.f32 %v540, %v640
        %v657 = vadd.f32 %v541, %v641
        %v658 = vadd.f32 %v542, %v642
        %v659 = vadd.f32 %v543, %v643
        %v660 = vadd.f32 %v544, %v644
        %v661 = vadd.f32 %v545, %v645
        %v662 = vadd.f32 %v546, %v646
        %v663 = vadd.f32 %v547, %v647
        %v664 = vadd.f32 %v548, %v648
        %v665 = vadd.f32 %v549, %v649
        %v666 = vadd.f32 %v550, %v650
        %v667 = vadd.f32 %v551, %v651
        %v668 = vadd.f32 %v552, %v652
        %v669 = vadd.f32 %v553, %v653
        %v670 = vlaneseq
        %v671 = vand.u32 %v670, 127
        %s672 = smul.u32 %s24, 128
        %v673 = vstv %s672
        %v674 = vadd.s32 %v671, %v673
        %vm675 = vcmp.lt.f32.partialorder %v654, 0.25048828
        %vm676 = vcmp.lt.f32.partialorder %v655, 0.25048828
        %vm677 = vcmp.lt.f32.partialorder %v656, 0.25048828
        %vm678 = vcmp.lt.f32.partialorder %v657, 0.25048828
        %vm679 = vcmp.lt.f32.partialorder %v658, 0.25048828
        %vm680 = vcmp.lt.f32.partialorder %v659, 0.25048828
        %vm681 = vcmp.lt.f32.partialorder %v660, 0.25048828
        %vm682 = vcmp.lt.f32.partialorder %v661, 0.25048828
        %vm683 = vcmp.lt.f32.partialorder %v662, 0.25048828
        %vm684 = vcmp.lt.f32.partialorder %v663, 0.25048828
        %vm685 = vcmp.lt.f32.partialorder %v664, 0.25048828
        %vm686 = vcmp.lt.f32.partialorder %v665, 0.25048828
        %vm687 = vcmp.lt.f32.partialorder %v666, 0.25048828
        %vm688 = vcmp.lt.f32.partialorder %v667, 0.25048828
        %vm689 = vcmp.lt.f32.partialorder %v668, 0.25048828
        %vm690 = vcmp.lt.f32.partialorder %v669, 0.25048828
        %vm691 = vcmp.lt.s32.totalorder %v674, 16
        %vm692 = vmand %vm675, %vm691
        %vm693 = vmand %vm676, %vm691
        %vm694 = vmand %vm677, %vm691
        %vm695 = vmand %vm678, %vm691
        %vm696 = vmand %vm679, %vm691
        %vm697 = vmand %vm680, %vm691
        %vm698 = vmand %vm681, %vm691
        %vm699 = vmand %vm682, %vm691
        %vm700 = vmand %vm683, %vm691
        %vm701 = vmand %vm684, %vm691
        %vm702 = vmand %vm685, %vm691
        %vm703 = vmand %vm686, %vm691
        %vm704 = vmand %vm687, %vm691
        %vm705 = vmand %vm688, %vm691
        %vm706 = vmand %vm689, %vm691
        %vm707 = vmand %vm690, %vm691
        %v708 = vsel %vm692, 1, 0
        %v709 = vsel %vm693, 1, 0
        %v710 = vsel %vm694, 1, 0
        %v711 = vsel %vm695, 1, 0
        %v712 = vsel %vm696, 1, 0
        %v713 = vsel %vm697, 1, 0
        %v714 = vsel %vm698, 1, 0
        %v715 = vsel %vm699, 1, 0
        %v716 = vsel %vm700, 1, 0
        %v717 = vsel %vm701, 1, 0
        %v718 = vsel %vm702, 1, 0
        %v719 = vsel %vm703, 1, 0
        %v720 = vsel %vm704, 1, 0
        %v721 = vsel %vm705, 1, 0
        %v722 = vsel %vm706, 1, 0
        %v723 = vsel %vm707, 1, 0
        %v724 = vcvt.s32.f32 %v708
        %v725 = vcvt.s32.f32 %v709
        %v726 = vcvt.s32.f32 %v710
        %v727 = vcvt.s32.f32 %v711
        %v728 = vcvt.s32.f32 %v712
        %v729 = vcvt.s32.f32 %v713
        %v730 = vcvt.s32.f32 %v714
        %v731 = vcvt.s32.f32 %v715
        %v732 = vcvt.s32.f32 %v716
        %v733 = vcvt.s32.f32 %v717
        %v734 = vcvt.s32.f32 %v718
        %v735 = vcvt.s32.f32 %v719
        %v736 = vcvt.s32.f32 %v720
        %v737 = vcvt.s32.f32 %v721
        %v738 = vcvt.s32.f32 %v722
        %v739 = vcvt.s32.f32 %v723
        %v740 = vlaneseq
        %v741 = vshrl.u32 %v740, 7
        %v742 = vadd.s32 %v741, 8
        %v743 = vadd.s32 %v741, 16
        %v744 = vadd.s32 %v741, 24
        %v745 = vadd.s32 %v741, 32
        %v746 = vadd.s32 %v741, 40
        %v747 = vadd.s32 %v741, 48
        %v748 = vadd.s32 %v741, 56
        %v749 = vadd.s32 %v741, 64
        %v750 = vadd.s32 %v741, 72
        %v751 = vadd.s32 %v741, 80
        %v752 = vadd.s32 %v741, 88
        %v753 = vadd.s32 %v741, 96
        %v754 = vadd.s32 %v741, 104
        %v755 = vadd.s32 %v741, 112
        %v756 = vadd.s32 %v741, 120
        %vm757 = vcmp.le.s32.totalorder %v741, %v671
        %vm758 = vcmp.le.s32.totalorder %v742, %v671
        %vm759 = vcmp.le.s32.totalorder %v743, %v671
        %vm760 = vcmp.le.s32.totalorder %v744, %v671
        %vm761 = vcmp.le.s32.totalorder %v745, %v671
        %vm762 = vcmp.le.s32.totalorder %v746, %v671
        %vm763 = vcmp.le.s32.totalorder %v747, %v671
        %vm764 = vcmp.le.s32.totalorder %v748, %v671
        %vm765 = vcmp.le.s32.totalorder %v749, %v671
        %vm766 = vcmp.le.s32.totalorder %v750, %v671
        %vm767 = vcmp.le.s32.totalorder %v751, %v671
        %vm768 = vcmp.le.s32.totalorder %v752, %v671
        %vm769 = vcmp.le.s32.totalorder %v753, %v671
        %vm770 = vcmp.le.s32.totalorder %v754, %v671
        %vm771 = vcmp.le.s32.totalorder %v755, %v671
        %vm772 = vcmp.le.s32.totalorder %v756, %v671
        %v773 = vsel %vm757, 1, 0
        %v774 = vsel %vm758, 1, 0
        %v775 = vsel %vm759, 1, 0
        %v776 = vsel %vm760, 1, 0
        %v777 = vsel %vm761, 1, 0
        %v778 = vsel %vm762, 1, 0
        %v779 = vsel %vm763, 1, 0
        %v780 = vsel %vm764, 1, 0
        %v781 = vsel %vm765, 1, 0
        %v782 = vsel %vm766, 1, 0
        %v783 = vsel %vm767, 1, 0
        %v784 = vsel %vm768, 1, 0
        %v785 = vsel %vm769, 1, 0
        %v786 = vsel %vm770, 1, 0
        %v787 = vsel %vm771, 1, 0
        %v788 = vsel %vm772, 1, 0
        %v789 = vcvt.s32.f32 %v773
        %v790 = vcvt.s32.f32 %v774
        %v791 = vcvt.s32.f32 %v775
        %v792 = vcvt.s32.f32 %v776
        %v793 = vcvt.s32.f32 %v777
        %v794 = vcvt.s32.f32 %v778
        %v795 = vcvt.s32.f32 %v779
        %v796 = vcvt.s32.f32 %v780
        %v797 = vcvt.s32.f32 %v781
        %v798 = vcvt.s32.f32 %v782
        %v799 = vcvt.s32.f32 %v783
        %v800 = vcvt.s32.f32 %v784
        %v801 = vcvt.s32.f32 %v785
        %v802 = vcvt.s32.f32 %v786
        %v803 = vcvt.s32.f32 %v787
        %v804 = vcvt.s32.f32 %v788
        %v805 = vpack.c.bf16 %v790, %v789
        %v806 = vpack.c.bf16 %v792, %v791
        %v807 = vpack.c.bf16 %v794, %v793
        %v808 = vpack.c.bf16 %v796, %v795
        %v809 = vpack.c.bf16 %v798, %v797
        %v810 = vpack.c.bf16 %v800, %v799
        %v811 = vpack.c.bf16 %v802, %v801
        %v812 = vpack.c.bf16 %v804, %v803
        %v813 = vpack.c.bf16 %v725, %v724
        %v814 = vpack.c.bf16 %v727, %v726
        %v815 = vpack.c.bf16 %v729, %v728
        %v816 = vpack.c.bf16 %v731, %v730
        %v817 = vpack.c.bf16 %v733, %v732
        %v818 = vpack.c.bf16 %v735, %v734
        %v819 = vpack.c.bf16 %v737, %v736
        %v820 = vpack.c.bf16 %v739, %v738
        %821 = vmatprep.subr.bf16.mxu0 0
        %822 = vmatpush1.bf16.msra.mxu0 %v812
        %823 = vmatprep.subr.bf16.mxu0 0
        %824 = vmatpush1.bf16.msra.mxu0 %v811
        %825 = vmatprep.subr.bf16.mxu0 0
        %826 = vmatpush1.bf16.msra.mxu0 %v810
        %827 = vmatprep.subr.bf16.mxu0 0
        %828 = vmatpush1.bf16.msra.mxu0 %v809
        %829 = vmatprep.subr.bf16.mxu0 0
        %830 = vmatpush1.bf16.msra.mxu0 %v808
        %831 = vmatprep.subr.bf16.mxu0 0
        %832 = vmatpush1.bf16.msra.mxu0 %v807
        %833 = vmatprep.subr.bf16.mxu0 0
        %834 = vmatpush1.bf16.msra.mxu0 %v806
        %835 = vmatprep.subr.bf16.mxu0 0
        %836 = vmatpush1.bf16.msra.mxu0 %v805
        %837 = vmatprep.subr.bf16.mxu0 0
        %838 = vmatpush2.bf16.msra.mxu0 0
        %839 = vmatprep.subr.bf16.mxu0 0
        %840 = vmatpush2.bf16.msra.mxu0 0
        %841 = vmatprep.subr.bf16.mxu0 0
        %842 = vmatpush2.bf16.msra.mxu0 0
        %843 = vmatprep.subr.bf16.mxu0 0
        %844 = vmatpush2.bf16.msra.mxu0 0
        %845 = vmatprep.subr.bf16.mxu0 0
        %846 = vmatpush2.bf16.msra.mxu0 0
        %847 = vmatprep.subr.bf16.mxu0 0
        %848 = vmatpush2.bf16.msra.mxu0 0
        %849 = vmatprep.subr.bf16.mxu0 0
        %850 = vmatpush2.bf16.msra.mxu0 0
        %851 = vmatprep.subr.bf16.mxu0 0
        %852 = vmatpush2.bf16.msra.mxu0 0
        %853 = vmatprep.mubr.bf16.mxu0 0
        %854 = vmatmul.mubr.bf16.gmra.mxu0 %v813
        %v855 = vpop.f32.mrf.mxu0
        %v856 = vadd.f32 0.0, %v855
        %v857 = vpop.f32.mrf.mxu0
        %v858 = vpop.f32.mrf.mxu0
        %v859 = vadd.f32 0.0, %v858
        %v860 = vpop.f32.mrf.mxu0
        %861 = vmatprep.mubr.bf16.mxu0 0
        %862 = vmatmul.mubr.bf16.gmra.mxu0 %v814
        %v863 = vpop.f32.mrf.mxu0
        %v864 = vadd.f32 0.0, %v863
        %v865 = vpop.f32.mrf.mxu0
        %v866 = vpop.f32.mrf.mxu0
        %v867 = vadd.f32 0.0, %v866
        %v868 = vpop.f32.mrf.mxu0
        %869 = vmatprep.mubr.bf16.mxu0 0
        %870 = vmatmul.mubr.bf16.gmra.mxu0 %v815
        %v871 = vpop.f32.mrf.mxu0
        %v872 = vadd.f32 0.0, %v871
        %v873 = vpop.f32.mrf.mxu0
        %v874 = vpop.f32.mrf.mxu0
        %v875 = vadd.f32 0.0, %v874
        %v876 = vpop.f32.mrf.mxu0
        %877 = vmatprep.mubr.bf16.mxu0 0
        %878 = vmatmul.mubr.bf16.gmra.mxu0 %v816
        %v879 = vpop.f32.mrf.mxu0
        %v880 = vadd.f32 0.0, %v879
        %v881 = vpop.f32.mrf.mxu0
        %v882 = vpop.f32.mrf.mxu0
        %v883 = vadd.f32 0.0, %v882
        %v884 = vpop.f32.mrf.mxu0
        %885 = vmatprep.mubr.bf16.mxu0 0
        %886 = vmatmul.mubr.bf16.gmra.mxu0 %v817
        %v887 = vpop.f32.mrf.mxu0
        %v888 = vadd.f32 0.0, %v887
        %v889 = vpop.f32.mrf.mxu0
        %v890 = vpop.f32.mrf.mxu0
        %v891 = vadd.f32 0.0, %v890
        %v892 = vpop.f32.mrf.mxu0
        %893 = vmatprep.mubr.bf16.mxu0 0
        %894 = vmatmul.mubr.bf16.gmra.mxu0 %v818
        %v895 = vpop.f32.mrf.mxu0
        %v896 = vadd.f32 0.0, %v895
        %v897 = vpop.f32.mrf.mxu0
        %v898 = vpop.f32.mrf.mxu0
        %v899 = vadd.f32 0.0, %v898
        %v900 = vpop.f32.mrf.mxu0
        %901 = vmatprep.mubr.bf16.mxu0 0
        %902 = vmatmul.mubr.bf16.gmra.mxu0 %v819
        %v903 = vpop.f32.mrf.mxu0
        %v904 = vadd.f32 0.0, %v903
        %v905 = vpop.f32.mrf.mxu0
        %v906 = vpop.f32.mrf.mxu0
        %v907 = vadd.f32 0.0, %v906
        %v908 = vpop.f32.mrf.mxu0
        %909 = vmatprep.mubr.bf16.mxu0 0
        %910 = vmatmul.mubr.bf16.gmra.mxu0 %v820
        %v911 = vpop.f32.mrf.mxu0
        %v912 = vadd.f32 0.0, %v911
        %v913 = vpop.f32.mrf.mxu0
        %v914 = vpop.f32.mrf.mxu0
        %v915 = vadd.f32 0.0, %v914
        %v916 = vpop.f32.mrf.mxu0
        %917 = vdwg.mxu0
        %v918 = vcvt.f32.s32.to.zero.pseudo %v856
        %v919 = vcvt.f32.s32.to.zero.pseudo %v859
        %v920 = vcvt.f32.s32.to.zero.pseudo %v864
        %v921 = vcvt.f32.s32.to.zero.pseudo %v867
        %v922 = vcvt.f32.s32.to.zero.pseudo %v872
        %v923 = vcvt.f32.s32.to.zero.pseudo %v875
        %v924 = vcvt.f32.s32.to.zero.pseudo %v880
        %v925 = vcvt.f32.s32.to.zero.pseudo %v883
        %v926 = vcvt.f32.s32.to.zero.pseudo %v888
        %v927 = vcvt.f32.s32.to.zero.pseudo %v891
        %v928 = vcvt.f32.s32.to.zero.pseudo %v896
        %v929 = vcvt.f32.s32.to.zero.pseudo %v899
        %v930 = vcvt.f32.s32.to.zero.pseudo %v904
        %v931 = vcvt.f32.s32.to.zero.pseudo %v907
        %v932 = vcvt.f32.s32.to.zero.pseudo %v912
        %v933 = vcvt.f32.s32.to.zero.pseudo %v915
        %v934 = vld [vmem:[#allocation3] sm:$0xff]
        %v935 = vld [vmem:[#allocation3 + $0x8] sm:$0xff]
        %v936 = vld [vmem:[#allocation3 + $0x10] sm:$0xff]
        %v937 = vld [vmem:[#allocation3 + $0x18] sm:$0xff]
        %v938 = vld [vmem:[#allocation3 + $0x20] sm:$0xff]
        %v939 = vld [vmem:[#allocation3 + $0x28] sm:$0xff]
        %v940 = vld [vmem:[#allocation3 + $0x30] sm:$0xff]
        %v941 = vld [vmem:[#allocation3 + $0x38] sm:$0xff]
        %v942 = vld [vmem:[#allocation3 + $0x40] sm:$0xff]
        %v943 = vld [vmem:[#allocation3 + $0x48] sm:$0xff]
        %v944 = vld [vmem:[#allocation3 + $0x50] sm:$0xff]
        %v945 = vld [vmem:[#allocation3 + $0x58] sm:$0xff]
        %v946 = vld [vmem:[#allocation3 + $0x60] sm:$0xff]
        %v947 = vld [vmem:[#allocation3 + $0x68] sm:$0xff]
        %v948 = vld [vmem:[#allocation3 + $0x70] sm:$0xff]
        %v949 = vld [vmem:[#allocation3 + $0x78] sm:$0xff]
        %950 = vset.pattern.permute.xlu0 0
        %951 = vperm.xlu0 %950, %v934
        %v952 = vpop.permute.xlu0 %951
        %953 = vset.pattern.permute.xlu0 0
        %954 = vperm.xlu0 %953, %v935
        %v955 = vpop.permute.xlu0 %954
        %956 = vset.pattern.permute.xlu0 0
        %957 = vperm.xlu0 %956, %v936
        %v958 = vpop.permute.xlu0 %957
        %959 = vset.pattern.permute.xlu0 0
        %960 = vperm.xlu0 %959, %v937
        %v961 = vpop.permute.xlu0 %960
        %962 = vset.pattern.permute.xlu0 0
        %963 = vperm.xlu0 %962, %v938
        %v964 = vpop.permute.xlu0 %963
        %965 = vset.pattern.permute.xlu0 0
        %966 = vperm.xlu0 %965, %v939
        %v967 = vpop.permute.xlu0 %966
        %968 = vset.pattern.permute.xlu0 0
        %969 = vperm.xlu0 %968, %v940
        %v970 = vpop.permute.xlu0 %969
        %971 = vset.pattern.permute.xlu0 0
        %972 = vperm.xlu0 %971, %v941
        %v973 = vpop.permute.xlu0 %972
        %974 = vset.pattern.permute.xlu0 0
        %975 = vperm.xlu0 %974, %v942
        %v976 = vpop.permute.xlu0 %975
        %977 = vset.pattern.permute.xlu0 0
        %978 = vperm.xlu0 %977, %v943
        %v979 = vpop.permute.xlu0 %978
        %980 = vset.pattern.permute.xlu0 0
        %981 = vperm.xlu0 %980, %v944
        %v982 = vpop.permute.xlu0 %981
        %983 = vset.pattern.permute.xlu0 0
        %984 = vperm.xlu0 %983, %v945
        %v985 = vpop.permute.xlu0 %984
        %986 = vset.pattern.permute.xlu0 0
        %987 = vperm.xlu0 %986, %v946
        %v988 = vpop.permute.xlu0 %987
        %989 = vset.pattern.permute.xlu0 0
        %990 = vperm.xlu0 %989, %v947
        %v991 = vpop.permute.xlu0 %990
        %992 = vset.pattern.permute.xlu0 0
        %993 = vperm.xlu0 %992, %v948
        %v994 = vpop.permute.xlu0 %993
        %995 = vset.pattern.permute.xlu0 0
        %996 = vperm.xlu0 %995, %v949
        %v997 = vpop.permute.xlu0 %996
        %v998 = vadd.s32 %v918, %v952
        %v999 = vadd.s32 %v919, %v955
        %v1000 = vadd.s32 %v920, %v958
        %v1001 = vadd.s32 %v921, %v961
        %v1002 = vadd.s32 %v922, %v964
        %v1003 = vadd.s32 %v923, %v967
        %v1004 = vadd.s32 %v924, %v970
        %v1005 = vadd.s32 %v925, %v973
        %v1006 = vadd.s32 %v926, %v976
        %v1007 = vadd.s32 %v927, %v979
        %v1008 = vadd.s32 %v928, %v982
        %v1009 = vadd.s32 %v929, %v985
        %v1010 = vadd.s32 %v930, %v988
        %v1011 = vadd.s32 %v931, %v991
        %v1012 = vadd.s32 %v932, %v994
        %v1013 = vadd.s32 %v933, %v997
        %1014 = vadd.xlane.f32.xlu0 %v724
        %v1015 = vpop.xlane.xlu0 %1014
        %1016 = vadd.xlane.f32.xlu0 %v725
        %v1017 = vpop.xlane.xlu0 %1016
        %1018 = vadd.xlane.f32.xlu0 %v726
        %v1019 = vpop.xlane.xlu0 %1018
        %1020 = vadd.xlane.f32.xlu0 %v727
        %v1021 = vpop.xlane.xlu0 %1020
        %1022 = vadd.xlane.f32.xlu0 %v728
        %v1023 = vpop.xlane.xlu0 %1022
        %1024 = vadd.xlane.f32.xlu0 %v729
        %v1025 = vpop.xlane.xlu0 %1024
        %1026 = vadd.xlane.f32.xlu0 %v730
        %v1027 = vpop.xlane.xlu0 %1026
        %1028 = vadd.xlane.f32.xlu0 %v731
        %v1029 = vpop.xlane.xlu0 %1028
        %1030 = vadd.xlane.f32.xlu0 %v732
        %v1031 = vpop.xlane.xlu0 %1030
        %1032 = vadd.xlane.f32.xlu0 %v733
        %v1033 = vpop.xlane.xlu0 %1032
        %1034 = vadd.xlane.f32.xlu0 %v734
        %v1035 = vpop.xlane.xlu0 %1034
        %1036 = vadd.xlane.f32.xlu0 %v735
        %v1037 = vpop.xlane.xlu0 %1036
        %1038 = vadd.xlane.f32.xlu0 %v736
        %v1039 = vpop.xlane.xlu0 %1038
        %1040 = vadd.xlane.f32.xlu0 %v737
        %v1041 = vpop.xlane.xlu0 %1040
        %1042 = vadd.xlane.f32.xlu0 %v738
        %v1043 = vpop.xlane.xlu0 %1042
        %1044 = vadd.xlane.f32.xlu0 %v739
        %v1045 = vpop.xlane.xlu0 %1044
        %v1046 = vcvt.f32.s32.to.zero.pseudo %v1015
        %v1047 = vcvt.f32.s32.to.zero.pseudo %v1017
        %v1048 = vcvt.f32.s32.to.zero.pseudo %v1019
        %v1049 = vcvt.f32.s32.to.zero.pseudo %v1021
        %v1050 = vcvt.f32.s32.to.zero.pseudo %v1023
        %v1051 = vcvt.f32.s32.to.zero.pseudo %v1025
        %v1052 = vcvt.f32.s32.to.zero.pseudo %v1027
        %v1053 = vcvt.f32.s32.to.zero.pseudo %v1029
        %v1054 = vcvt.f32.s32.to.zero.pseudo %v1031
        %v1055 = vcvt.f32.s32.to.zero.pseudo %v1033
        %v1056 = vcvt.f32.s32.to.zero.pseudo %v1035
        %v1057 = vcvt.f32.s32.to.zero.pseudo %v1037
        %v1058 = vcvt.f32.s32.to.zero.pseudo %v1039
        %v1059 = vcvt.f32.s32.to.zero.pseudo %v1041
        %v1060 = vcvt.f32.s32.to.zero.pseudo %v1043
        %v1061 = vcvt.f32.s32.to.zero.pseudo %v1045
        %v1062 = vadd.s32 %v934, %v1046
        %v1063 = vadd.s32 %v935, %v1047
        %v1064 = vadd.s32 %v936, %v1048
        %v1065 = vadd.s32 %v937, %v1049
        %v1066 = vadd.s32 %v938, %v1050
        %v1067 = vadd.s32 %v939, %v1051
        %v1068 = vadd.s32 %v940, %v1052
        %v1069 = vadd.s32 %v941, %v1053
        %v1070 = vadd.s32 %v942, %v1054
        %v1071 = vadd.s32 %v943, %v1055
        %v1072 = vadd.s32 %v944, %v1056
        %v1073 = vadd.s32 %v945, %v1057
        %v1074 = vadd.s32 %v946, %v1058
        %v1075 = vadd.s32 %v947, %v1059
        %v1076 = vadd.s32 %v948, %v1060
        %v1077 = vadd.s32 %v949, %v1061
        %vm1078 = vcmask 7168
        %1079 = vst.msk [vmem:[#allocation3] sm:$0xff] %vm1078, %v1062
        %1080 = vst.msk [vmem:[#allocation3 + $0x8] sm:$0xff] %vm1078, %v1063
        %1081 = vst.msk [vmem:[#allocation3 + $0x10] sm:$0xff] %vm1078, %v1064
        %1082 = vst.msk [vmem:[#allocation3 + $0x18] sm:$0xff] %vm1078, %v1065
        %1083 = vst.msk [vmem:[#allocation3 + $0x20] sm:$0xff] %vm1078, %v1066
        %1084 = vst.msk [vmem:[#allocation3 + $0x28] sm:$0xff] %vm1078, %v1067
        %1085 = vst.msk [vmem:[#allocation3 + $0x30] sm:$0xff] %vm1078, %v1068
        %1086 = vst.msk [vmem:[#allocation3 + $0x38] sm:$0xff] %vm1078, %v1069
        %1087 = vst.msk [vmem:[#allocation3 + $0x40] sm:$0xff] %vm1078, %v1070
        %1088 = vst.msk [vmem:[#allocation3 + $0x48] sm:$0xff] %vm1078, %v1071
        %1089 = vst.msk [vmem:[#allocation3 + $0x50] sm:$0xff] %vm1078, %v1072
        %1090 = vst.msk [vmem:[#allocation3 + $0x58] sm:$0xff] %vm1078, %v1073
        %1091 = vst.msk [vmem:[#allocation3 + $0x60] sm:$0xff] %vm1078, %v1074
        %1092 = vst.msk [vmem:[#allocation3 + $0x68] sm:$0xff] %vm1078, %v1075
        %1093 = vst.msk [vmem:[#allocation3 + $0x70] sm:$0xff] %vm1078, %v1076
        %1094 = vst.msk [vmem:[#allocation3 + $0x78] sm:$0xff] %vm1078, %v1077
        %vm1095 = vcmp.eq.s32.totalorder %v998, 1
        %vm1096 = vcmp.eq.s32.totalorder %v999, 1
        %vm1097 = vcmp.eq.s32.totalorder %v1000, 1
        %vm1098 = vcmp.eq.s32.totalorder %v1001, 1
        %vm1099 = vcmp.eq.s32.totalorder %v1002, 1
        %vm1100 = vcmp.eq.s32.totalorder %v1003, 1
        %vm1101 = vcmp.eq.s32.totalorder %v1004, 1
        %vm1102 = vcmp.eq.s32.totalorder %v1005, 1
        %vm1103 = vcmp.eq.s32.totalorder %v1006, 1
        %vm1104 = vcmp.eq.s32.totalorder %v1007, 1
        %vm1105 = vcmp.eq.s32.totalorder %v1008, 1
        %vm1106 = vcmp.eq.s32.totalorder %v1009, 1
        %vm1107 = vcmp.eq.s32.totalorder %v1010, 1
        %vm1108 = vcmp.eq.s32.totalorder %v1011, 1
        %vm1109 = vcmp.eq.s32.totalorder %v1012, 1
        %vm1110 = vcmp.eq.s32.totalorder %v1013, 1
        %vm1111 = vmand %vm692, %vm1095
        %vm1112 = vmand %vm693, %vm1096
        %vm1113 = vmand %vm694, %vm1097
        %vm1114 = vmand %vm695, %vm1098
        %vm1115 = vmand %vm696, %vm1099
        %vm1116 = vmand %vm697, %vm1100
        %vm1117 = vmand %vm698, %vm1101
        %vm1118 = vmand %vm699, %vm1102
        %vm1119 = vmand %vm700, %vm1103
        %vm1120 = vmand %vm701, %vm1104
        %vm1121 = vmand %vm702, %vm1105
        %vm1122 = vmand %vm703, %vm1106
        %vm1123 = vmand %vm704, %vm1107
        %vm1124 = vmand %vm705, %vm1108
        %vm1125 = vmand %vm706, %vm1109
        %vm1126 = vmand %vm707, %vm1110
        %v1127 = vsel %vm1111, 1, 0
        %v1128 = vsel %vm1112, 1, 0
        %v1129 = vsel %vm1113, 1, 0
        %v1130 = vsel %vm1114, 1, 0
        %v1131 = vsel %vm1115, 1, 0
        %v1132 = vsel %vm1116, 1, 0
        %v1133 = vsel %vm1117, 1, 0
        %v1134 = vsel %vm1118, 1, 0
        %v1135 = vsel %vm1119, 1, 0
        %v1136 = vsel %vm1120, 1, 0
        %v1137 = vsel %vm1121, 1, 0
        %v1138 = vsel %vm1122, 1, 0
        %v1139 = vsel %vm1123, 1, 0
        %v1140 = vsel %vm1124, 1, 0
        %v1141 = vsel %vm1125, 1, 0
        %v1142 = vsel %vm1126, 1, 0
        %v1143 = vcvt.s32.f32 %v1127
        %v1144 = vcvt.s32.f32 %v1128
        %v1145 = vcvt.s32.f32 %v1129
        %v1146 = vcvt.s32.f32 %v1130
        %v1147 = vcvt.s32.f32 %v1131
        %v1148 = vcvt.s32.f32 %v1132
        %v1149 = vcvt.s32.f32 %v1133
        %v1150 = vcvt.s32.f32 %v1134
        %v1151 = vcvt.s32.f32 %v1135
        %v1152 = vcvt.s32.f32 %v1136
        %v1153 = vcvt.s32.f32 %v1137
        %v1154 = vcvt.s32.f32 %v1138
        %v1155 = vcvt.s32.f32 %v1139
        %v1156 = vcvt.s32.f32 %v1140
        %v1157 = vcvt.s32.f32 %v1141
        %v1158 = vcvt.s32.f32 %v1142
        %vm1159 = vcmp.eq.s32.totalorder %v998, 2
        %vm1160 = vcmp.eq.s32.totalorder %v999, 2
        %vm1161 = vcmp.eq.s32.totalorder %v1000, 2
        %vm1162 = vcmp.eq.s32.totalorder %v1001, 2
        %vm1163 = vcmp.eq.s32.totalorder %v1002, 2
        %vm1164 = vcmp.eq.s32.totalorder %v1003, 2
        %vm1165 = vcmp.eq.s32.totalorder %v1004, 2
        %vm1166 = vcmp.eq.s32.totalorder %v1005, 2
        %vm1167 = vcmp.eq.s32.totalorder %v1006, 2
        %vm1168 = vcmp.eq.s32.totalorder %v1007, 2
        %vm1169 = vcmp.eq.s32.totalorder %v1008, 2
        %vm1170 = vcmp.eq.s32.totalorder %v1009, 2
        %vm1171 = vcmp.eq.s32.totalorder %v1010, 2
        %vm1172 = vcmp.eq.s32.totalorder %v1011, 2
        %vm1173 = vcmp.eq.s32.totalorder %v1012, 2
        %vm1174 = vcmp.eq.s32.totalorder %v1013, 2
        %vm1175 = vmand %vm692, %vm1159
        %vm1176 = vmand %vm693, %vm1160
        %vm1177 = vmand %vm694, %vm1161
        %vm1178 = vmand %vm695, %vm1162
        %vm1179 = vmand %vm696, %vm1163
        %vm1180 = vmand %vm697, %vm1164
        %vm1181 = vmand %vm698, %vm1165
        %vm1182 = vmand %vm699, %vm1166
        %vm1183 = vmand %vm700, %vm1167
        %vm1184 = vmand %vm701, %vm1168
        %vm1185 = vmand %vm702, %vm1169
        %vm1186 = vmand %vm703, %vm1170
        %vm1187 = vmand %vm704, %vm1171
        %vm1188 = vmand %vm705, %vm1172
        %vm1189 = vmand %vm706, %vm1173
        %vm1190 = vmand %vm707, %vm1174
        %v1191 = vsel %vm1175, 1, 0
        %v1192 = vsel %vm1176, 1, 0
        %v1193 = vsel %vm1177, 1, 0
        %v1194 = vsel %vm1178, 1, 0
        %v1195 = vsel %vm1179, 1, 0
        %v1196 = vsel %vm1180, 1, 0
        %v1197 = vsel %vm1181, 1, 0
        %v1198 = vsel %vm1182, 1, 0
        %v1199 = vsel %vm1183, 1, 0
        %v1200 = vsel %vm1184, 1, 0
        %v1201 = vsel %vm1185, 1, 0
        %v1202 = vsel %vm1186, 1, 0
        %v1203 = vsel %vm1187, 1, 0
        %v1204 = vsel %vm1188, 1, 0
        %v1205 = vsel %vm1189, 1, 0
        %v1206 = vsel %vm1190, 1, 0
        %v1207 = vcvt.s32.f32 %v1191
        %v1208 = vcvt.s32.f32 %v1192
        %v1209 = vcvt.s32.f32 %v1193
        %v1210 = vcvt.s32.f32 %v1194
        %v1211 = vcvt.s32.f32 %v1195
        %v1212 = vcvt.s32.f32 %v1196
        %v1213 = vcvt.s32.f32 %v1197
        %v1214 = vcvt.s32.f32 %v1198
        %v1215 = vcvt.s32.f32 %v1199
        %v1216 = vcvt.s32.f32 %v1200
        %v1217 = vcvt.s32.f32 %v1201
        %v1218 = vcvt.s32.f32 %v1202
        %v1219 = vcvt.s32.f32 %v1203
        %v1220 = vcvt.s32.f32 %v1204
        %v1221 = vcvt.s32.f32 %v1205
        %v1222 = vcvt.s32.f32 %v1206
        %vm1223 = vcmp.eq.s32.totalorder %v998, 3
        %vm1224 = vcmp.eq.s32.totalorder %v999, 3
        %vm1225 = vcmp.eq.s32.totalorder %v1000, 3
        %vm1226 = vcmp.eq.s32.totalorder %v1001, 3
        %vm1227 = vcmp.eq.s32.totalorder %v1002, 3
        %vm1228 = vcmp.eq.s32.totalorder %v1003, 3
        %vm1229 = vcmp.eq.s32.totalorder %v1004, 3
        %vm1230 = vcmp.eq.s32.totalorder %v1005, 3
        %vm1231 = vcmp.eq.s32.totalorder %v1006, 3
        %vm1232 = vcmp.eq.s32.totalorder %v1007, 3
        %vm1233 = vcmp.eq.s32.totalorder %v1008, 3
        %vm1234 = vcmp.eq.s32.totalorder %v1009, 3
        %vm1235 = vcmp.eq.s32.totalorder %v1010, 3
        %vm1236 = vcmp.eq.s32.totalorder %v1011, 3
        %vm1237 = vcmp.eq.s32.totalorder %v1012, 3
        %vm1238 = vcmp.eq.s32.totalorder %v1013, 3
        %vm1239 = vmand %vm692, %vm1223
        %vm1240 = vmand %vm693, %vm1224
        %vm1241 = vmand %vm694, %vm1225
        %vm1242 = vmand %vm695, %vm1226
        %vm1243 = vmand %vm696, %vm1227
        %vm1244 = vmand %vm697, %vm1228
        %vm1245 = vmand %vm698, %vm1229
        %vm1246 = vmand %vm699, %vm1230
        %vm1247 = vmand %vm700, %vm1231
        %vm1248 = vmand %vm701, %vm1232
        %vm1249 = vmand %vm702, %vm1233
        %vm1250 = vmand %vm703, %vm1234
        %vm1251 = vmand %vm704, %vm1235
        %vm1252 = vmand %vm705, %vm1236
        %vm1253 = vmand %vm706, %vm1237
        %vm1254 = vmand %vm707, %vm1238
        %v1255 = vsel %vm1239, 1, 0
        %v1256 = vsel %vm1240, 1, 0
        %v1257 = vsel %vm1241, 1, 0
        %v1258 = vsel %vm1242, 1, 0
        %v1259 = vsel %vm1243, 1, 0
        %v1260 = vsel %vm1244, 1, 0
        %v1261 = vsel %vm1245, 1, 0
        %v1262 = vsel %vm1246, 1, 0
        %v1263 = vsel %vm1247, 1, 0
        %v1264 = vsel %vm1248, 1, 0
        %v1265 = vsel %vm1249, 1, 0
        %v1266 = vsel %vm1250, 1, 0
        %v1267 = vsel %vm1251, 1, 0
        %v1268 = vsel %vm1252, 1, 0
        %v1269 = vsel %vm1253, 1, 0
        %v1270 = vsel %vm1254, 1, 0
        %v1271 = vcvt.s32.f32 %v1255
        %v1272 = vcvt.s32.f32 %v1256
        %v1273 = vcvt.s32.f32 %v1257
        %v1274 = vcvt.s32.f32 %v1258
        %v1275 = vcvt.s32.f32 %v1259
        %v1276 = vcvt.s32.f32 %v1260
        %v1277 = vcvt.s32.f32 %v1261
        %v1278 = vcvt.s32.f32 %v1262
        %v1279 = vcvt.s32.f32 %v1263
        %v1280 = vcvt.s32.f32 %v1264
        %v1281 = vcvt.s32.f32 %v1265
        %v1282 = vcvt.s32.f32 %v1266
        %v1283 = vcvt.s32.f32 %v1267
        %v1284 = vcvt.s32.f32 %v1268
        %v1285 = vcvt.s32.f32 %v1269
        %v1286 = vcvt.s32.f32 %v1270
        %vm1287 = vcmp.eq.s32.totalorder %v998, 4
        %vm1288 = vcmp.eq.s32.totalorder %v999, 4
        %vm1289 = vcmp.eq.s32.totalorder %v1000, 4
        %vm1290 = vcmp.eq.s32.totalorder %v1001, 4
        %vm1291 = vcmp.eq.s32.totalorder %v1002, 4
        %vm1292 = vcmp.eq.s32.totalorder %v1003, 4
        %vm1293 = vcmp.eq.s32.totalorder %v1004, 4
        %vm1294 = vcmp.eq.s32.totalorder %v1005, 4
        %vm1295 = vcmp.eq.s32.totalorder %v1006, 4
        %vm1296 = vcmp.eq.s32.totalorder %v1007, 4
        %vm1297 = vcmp.eq.s32.totalorder %v1008, 4
        %vm1298 = vcmp.eq.s32.totalorder %v1009, 4
        %vm1299 = vcmp.eq.s32.totalorder %v1010, 4
        %vm1300 = vcmp.eq.s32.totalorder %v1011, 4
        %vm1301 = vcmp.eq.s32.totalorder %v1012, 4
        %vm1302 = vcmp.eq.s32.totalorder %v1013, 4
        %vm1303 = vmand %vm692, %vm1287
        %vm1304 = vmand %vm693, %vm1288
        %vm1305 = vmand %vm694, %vm1289
        %vm1306 = vmand %vm695, %vm1290
        %vm1307 = vmand %vm696, %vm1291
        %vm1308 = vmand %vm697, %vm1292
        %vm1309 = vmand %vm698, %vm1293
        %vm1310 = vmand %vm699, %vm1294
        %vm1311 = vmand %vm700, %vm1295
        %vm1312 = vmand %vm701, %vm1296
        %vm1313 = vmand %vm702, %vm1297
        %vm1314 = vmand %vm703, %vm1298
        %vm1315 = vmand %vm704, %vm1299
        %vm1316 = vmand %vm705, %vm1300
        %vm1317 = vmand %vm706, %vm1301
        %vm1318 = vmand %vm707, %vm1302
        %v1319 = vsel %vm1303, 1, 0
        %v1320 = vsel %vm1304, 1, 0
        %v1321 = vsel %vm1305, 1, 0
        %v1322 = vsel %vm1306, 1, 0
        %v1323 = vsel %vm1307, 1, 0
        %v1324 = vsel %vm1308, 1, 0
        %v1325 = vsel %vm1309, 1, 0
        %v1326 = vsel %vm1310, 1, 0
        %v1327 = vsel %vm1311, 1, 0
        %v1328 = vsel %vm1312, 1, 0
        %v1329 = vsel %vm1313, 1, 0
        %v1330 = vsel %vm1314, 1, 0
        %v1331 = vsel %vm1315, 1, 0
        %v1332 = vsel %vm1316, 1, 0
        %v1333 = vsel %vm1317, 1, 0
        %v1334 = vsel %vm1318, 1, 0
        %v1335 = vcvt.s32.f32 %v1319
        %v1336 = vcvt.s32.f32 %v1320
        %v1337 = vcvt.s32.f32 %v1321
        %v1338 = vcvt.s32.f32 %v1322
        %v1339 = vcvt.s32.f32 %v1323
        %v1340 = vcvt.s32.f32 %v1324
        %v1341 = vcvt.s32.f32 %v1325
        %v1342 = vcvt.s32.f32 %v1326
        %v1343 = vcvt.s32.f32 %v1327
        %v1344 = vcvt.s32.f32 %v1328
        %v1345 = vcvt.s32.f32 %v1329
        %v1346 = vcvt.s32.f32 %v1330
        %v1347 = vcvt.s32.f32 %v1331
        %v1348 = vcvt.s32.f32 %v1332
        %v1349 = vcvt.s32.f32 %v1333
        %v1350 = vcvt.s32.f32 %v1334
        %v1351 = vld [vmem:[#allocation2] sm:$0xff]
        %v1352 = vld [vmem:[#allocation2 + $0x8] sm:$0xff]
        %v1353 = vld [vmem:[#allocation2 + $0x10] sm:$0xff]
        %v1354 = vld [vmem:[#allocation2 + $0x18] sm:$0xff]
        %1355 = vmatprep.subr.mxu0 0.0
        %1356 = vmatpush1.xpose.msra.mxu0 %v1158
        %1357 = vmatprep.subr.mxu0 0.0
        %1358 = vmatpush1.xpose.msra.mxu0 %v1157
        %1359 = vmatprep.subr.mxu0 0.0
        %1360 = vmatpush1.xpose.msra.mxu0 %v1156
        %1361 = vmatprep.subr.mxu0 0.0
        %1362 = vmatpush1.xpose.msra.mxu0 %v1155
        %1363 = vmatprep.subr.mxu0 0.0
        %1364 = vmatpush1.xpose.msra.mxu0 %v1154
        %1365 = vmatprep.subr.mxu0 0.0
        %1366 = vmatpush1.xpose.msra.mxu0 %v1153
        %1367 = vmatprep.subr.mxu0 0.0
        %1368 = vmatpush1.xpose.msra.mxu0 %v1152
        %1369 = vmatprep.subr.mxu0 0.0
        %1370 = vmatpush1.xpose.msra.mxu0 %v1151
        %1371 = vmatprep.subr.mxu0 0.0
        %1372 = vmatpush1.xpose.msra.mxu0 %v1150
        %1373 = vmatprep.subr.mxu0 0.0
        %1374 = vmatpush1.xpose.msra.mxu0 %v1149
        %1375 = vmatprep.subr.mxu0 0.0
        %1376 = vmatpush1.xpose.msra.mxu0 %v1148
        %1377 = vmatprep.subr.mxu0 0.0
        %1378 = vmatpush1.xpose.msra.mxu0 %v1147
        %1379 = vmatprep.subr.mxu0 0.0
        %1380 = vmatpush1.xpose.msra.mxu0 %v1146
        %1381 = vmatprep.subr.mxu0 0.0
        %1382 = vmatpush1.xpose.msra.mxu0 %v1145
        %1383 = vmatprep.subr.mxu0 0.0
        %1384 = vmatpush1.xpose.msra.mxu0 %v1144
        %1385 = vmatprep.subr.mxu0 0.0
        %1386 = vmatpush1.xpose.msra.mxu0 %v1143
        %1387 = vmatprep.subr.mxu0 0.0
        %1388 = vmatpush2.xpose.msra.mxu0 %v1222
        %1389 = vmatprep.subr.mxu0 0.0
        %1390 = vmatpush2.xpose.msra.mxu0 %v1221
        %1391 = vmatprep.subr.mxu0 0.0
        %1392 = vmatpush2.xpose.msra.mxu0 %v1220
        %1393 = vmatprep.subr.mxu0 0.0
        %1394 = vmatpush2.xpose.msra.mxu0 %v1219
        %1395 = vmatprep.subr.mxu0 0.0
        %1396 = vmatpush2.xpose.msra.mxu0 %v1218
        %1397 = vmatprep.subr.mxu0 0.0
        %1398 = vmatpush2.xpose.msra.mxu0 %v1217
        %1399 = vmatprep.subr.mxu0 0.0
        %1400 = vmatpush2.xpose.msra.mxu0 %v1216
        %1401 = vmatprep.subr.mxu0 0.0
        %1402 = vmatpush2.xpose.msra.mxu0 %v1215
        %1403 = vmatprep.subr.mxu0 0.0
        %1404 = vmatpush2.xpose.msra.mxu0 %v1214
        %1405 = vmatprep.subr.mxu0 0.0
        %1406 = vmatpush2.xpose.msra.mxu0 %v1213
        %1407 = vmatprep.subr.mxu0 0.0
        %1408 = vmatpush2.xpose.msra.mxu0 %v1212
        %1409 = vmatprep.subr.mxu0 0.0
        %1410 = vmatpush2.xpose.msra.mxu0 %v1211
        %1411 = vmatprep.subr.mxu0 0.0
        %1412 = vmatpush2.xpose.msra.mxu0 %v1210
        %1413 = vmatprep.subr.mxu0 0.0
        %1414 = vmatpush2.xpose.msra.mxu0 %v1209
        %1415 = vmatprep.subr.mxu0 0.0
        %1416 = vmatpush2.xpose.msra.mxu0 %v1208
        %1417 = vmatprep.subr.mxu0 0.0
        %1418 = vmatpush2.xpose.msra.mxu0 %v1207
        %1419 = vmatprep.mubr.f32.mxu0 0.0
        %1420 = vmatmul.mubr.f32.gmra.mxu0 %v263
        %v1421 = vpop.f32.mrf.mxu0
        %v1422 = vadd.f32 0.0, %v1421
        %v1423 = vpop.f32.mrf.mxu0
        %v1424 = vadd.f32 0.0, %v1423
        %1425 = vdwg.mxu0
        %1426 = vmatprep.subr.mxu0 0.0
        %1427 = vmatpush1.xpose.msra.mxu0 %v1286
        %1428 = vmatprep.subr.mxu0 0.0
        %1429 = vmatpush1.xpose.msra.mxu0 %v1285
        %1430 = vmatprep.subr.mxu0 0.0
        %1431 = vmatpush1.xpose.msra.mxu0 %v1284
        %1432 = vmatprep.subr.mxu0 0.0
        %1433 = vmatpush1.xpose.msra.mxu0 %v1283
        %1434 = vmatprep.subr.mxu0 0.0
        %1435 = vmatpush1.xpose.msra.mxu0 %v1282
        %1436 = vmatprep.subr.mxu0 0.0
        %1437 = vmatpush1.xpose.msra.mxu0 %v1281
        %1438 = vmatprep.subr.mxu0 0.0
        %1439 = vmatpush1.xpose.msra.mxu0 %v1280
        %1440 = vmatprep.subr.mxu0 0.0
        %1441 = vmatpush1.xpose.msra.mxu0 %v1279
        %1442 = vmatprep.subr.mxu0 0.0
        %1443 = vmatpush1.xpose.msra.mxu0 %v1278
        %1444 = vmatprep.subr.mxu0 0.0
        %1445 = vmatpush1.xpose.msra.mxu0 %v1277
        %1446 = vmatprep.subr.mxu0 0.0
        %1447 = vmatpush1.xpose.msra.mxu0 %v1276
        %1448 = vmatprep.subr.mxu0 0.0
        %1449 = vmatpush1.xpose.msra.mxu0 %v1275
        %1450 = vmatprep.subr.mxu0 0.0
        %1451 = vmatpush1.xpose.msra.mxu0 %v1274
        %1452 = vmatprep.subr.mxu0 0.0
        %1453 = vmatpush1.xpose.msra.mxu0 %v1273
        %1454 = vmatprep.subr.mxu0 0.0
        %1455 = vmatpush1.xpose.msra.mxu0 %v1272
        %1456 = vmatprep.subr.mxu0 0.0
        %1457 = vmatpush1.xpose.msra.mxu0 %v1271
        %1458 = vmatprep.subr.mxu0 0.0
        %1459 = vmatpush2.xpose.msra.mxu0 %v1350
        %1460 = vmatprep.subr.mxu0 0.0
        %1461 = vmatpush2.xpose.msra.mxu0 %v1349
        %1462 = vmatprep.subr.mxu0 0.0
        %1463 = vmatpush2.xpose.msra.mxu0 %v1348
        %1464 = vmatprep.subr.mxu0 0.0
        %1465 = vmatpush2.xpose.msra.mxu0 %v1347
        %1466 = vmatprep.subr.mxu0 0.0
        %1467 = vmatpush2.xpose.msra.mxu0 %v1346
        %1468 = vmatprep.subr.mxu0 0.0
        %1469 = vmatpush2.xpose.msra.mxu0 %v1345
        %1470 = vmatprep.subr.mxu0 0.0
        %1471 = vmatpush2.xpose.msra.mxu0 %v1344
        %1472 = vmatprep.subr.mxu0 0.0
        %1473 = vmatpush2.xpose.msra.mxu0 %v1343
        %1474 = vmatprep.subr.mxu0 0.0
        %1475 = vmatpush2.xpose.msra.mxu0 %v1342
        %1476 = vmatprep.subr.mxu0 0.0
        %1477 = vmatpush2.xpose.msra.mxu0 %v1341
        %1478 = vmatprep.subr.mxu0 0.0
        %1479 = vmatpush2.xpose.msra.mxu0 %v1340
        %1480 = vmatprep.subr.mxu0 0.0
        %1481 = vmatpush2.xpose.msra.mxu0 %v1339
        %1482 = vmatprep.subr.mxu0 0.0
        %1483 = vmatpush2.xpose.msra.mxu0 %v1338
        %1484 = vmatprep.subr.mxu0 0.0
        %1485 = vmatpush2.xpose.msra.mxu0 %v1337
        %1486 = vmatprep.subr.mxu0 0.0
        %1487 = vmatpush2.xpose.msra.mxu0 %v1336
        %1488 = vmatprep.subr.mxu0 0.0
        %1489 = vmatpush2.xpose.msra.mxu0 %v1335
        %1490 = vmatprep.mubr.f32.mxu0 0.0
        %1491 = vmatmul.mubr.f32.gmra.mxu0 %v263
        %v1492 = vpop.f32.mrf.mxu0
        %v1493 = vadd.f32 0.0, %v1492
        %v1494 = vpop.f32.mrf.mxu0
        %v1495 = vadd.f32 0.0, %v1494
        %1496 = vdwg.mxu0
        %v1497 = vadd.f32 %v1351, %v1422
        %v1498 = vadd.f32 %v1352, %v1424
        %v1499 = vadd.f32 %v1353, %v1493
        %v1500 = vadd.f32 %v1354, %v1495
        %1501 = vst [vmem:[#allocation2] sm:$0xff] %v1497
        %1502 = vst [vmem:[#allocation2 + $0x8] sm:$0xff] %v1498
        %1503 = vst [vmem:[#allocation2 + $0x10] sm:$0xff] %v1499
        %1504 = vst [vmem:[#allocation2 + $0x18] sm:$0xff] %v1500
        // Predicated region
        $region37: #{tpu_custom_call.1} parent=31 // pred_check
          %p1505 = pneg %p280
        $region38: #{tpu_custom_call.1} parent=31 // pred_check_branch
          %1507 = sbr.rel (%p1505) target = $region40
        $region39: #{tpu_custom_call.1} parent=31 // pred_region
          %v1508 = vld [vmem:[%s261] sm:$0x7f]
          %v1509 = vld [vmem:[#allocation4] sm:$0x7f]
          %v1510 = vld [vmem:[#allocation2] sm:$0x7f]
          %v1511 = vld [vmem:[#allocation2 + $0x7] ss:$0 sm:$0xff]
          %vm1512 = vcmp.gt.f32.partialorder %v1511, 0.5
          %v1513 = vsel %vm1512, 1, 0
          %vm1514 = vcmp.eq.s32.totalorder %v1513, 1
          %1516 = vset.pattern.permute.xlu0 0
          %1517 = vperm.xlu0 %1516, %v1509
          %v1518 = vpop.permute.xlu0 %1517
          %v1520 = vsel %vm1514, %v1510, %v1518
          %v1521 = vsub.f32 %v1520, %v1508
          %v1523 = vcombine.high %v1521, %v1521
          %v1525 = vunpack.c.l.s4 1966171168
          %v1526 = vunpack.c.0.s8 %v1525
          %v1527 = vlaneseq
          %v1528 = vshrl.u32 %v1527, 7
          %v1529 = vsub.s32 %v1526, %v1528
          %v1530 = vrot.slane %v1521, %v1529
          %v1532 = vunpack.c.l.s4 1966171168
          %v1533 = vunpack.c.0.s8 %v1532
          %v1534 = vlaneseq
          %v1535 = vshrl.u32 %v1534, 7
          %v1536 = vsub.s32 %v1533, %v1535
          %v1537 = vrot.slane %v1523, %v1536
          %v1538 = vcombine.high %v1530, %v1530
          %v1539 = vcombine.high %v1537, %v1537
          %v1541 = vunpack.c.l.s4 1966171168
          %v1542 = vunpack.c.0.s8 %v1541
          %v1543 = vlaneseq
          %v1544 = vshrl.u32 %v1543, 7
          %v1545 = vsub.s32 %v1542, %v1544
          %v1546 = vrot.slane %v1530, %v1545
          %v1548 = vunpack.c.l.s4 1966171168
          %v1549 = vunpack.c.0.s8 %v1548
          %v1550 = vlaneseq
          %v1551 = vshrl.u32 %v1550, 7
          %v1552 = vsub.s32 %v1549, %v1551
          %v1553 = vrot.slane %v1537, %v1552
          %v1555 = vunpack.c.l.s4 1966171168
          %v1556 = vunpack.c.0.s8 %v1555
          %v1557 = vlaneseq
          %v1558 = vshrl.u32 %v1557, 7
          %v1559 = vsub.s32 %v1556, %v1558
          %v1560 = vrot.slane %v1538, %v1559
          %v1562 = vunpack.c.l.s4 1966171168
          %v1563 = vunpack.c.0.s8 %v1562
          %v1564 = vlaneseq
          %v1565 = vshrl.u32 %v1564, 7
          %v1566 = vsub.s32 %v1563, %v1565
          %v1567 = vrot.slane %v1539, %v1566
          %v1568 = vcombine.high %v1546, %v1546
          %v1569 = vcombine.high %v1553, %v1553
          %v1570 = vcombine.high %v1560, %v1560
          %1578 = vst [vmem:[%s237] sm:$0x1] %v1546
          %1579 = vst [vmem:[%s237 + $0x4] sm:$0x1] %v1560
          %1580 = vst [vmem:[%s237 + $0x8] sm:$0x1] %v1568
          %1581 = vst [vmem:[%s237 + $0xc] sm:$0x1] %v1570
          %1582 = vst [vmem:[%s237 + $0x10] sm:$0x1] %v1553
          %1583 = vst [vmem:[%s237 + $0x14] sm:$0x1] %v1567
          %1584 = vst [vmem:[%s237 + $0x18] sm:$0x1] %v1569
          %v1585 = vld [vmem:[#allocation2 + $0x8] sm:$0x7f]
          %v1586 = vld [vmem:[#allocation2 + $0xf] ss:$0 sm:$0xff]
          %vm1587 = vcmp.gt.f32.partialorder %v1586, 0.5
          %v1588 = vsel %vm1587, 1, 0
          %vm1589 = vcmp.eq.s32.totalorder %v1588, 1
          %v1590 = vsel %vm1589, %v1585, %v1520
          %v1591 = vsub.f32 %v1590, %v1508
          %v1593 = vcombine.high %v1591, %v1591
          %v1595 = vunpack.c.l.s4 1966171168
          %v1596 = vunpack.c.0.s8 %v1595
          %v1597 = vlaneseq
          %v1598 = vshrl.u32 %v1597, 7
          %v1599 = vsub.s32 %v1596, %v1598
          %v1600 = vrot.slane %v1591, %v1599
          %v1602 = vunpack.c.l.s4 1966171168
          %v1603 = vunpack.c.0.s8 %v1602
          %v1604 = vlaneseq
          %v1605 = vshrl.u32 %v1604, 7
          %v1606 = vsub.s32 %v1603, %v1605
          %v1607 = vrot.slane %v1593, %v1606
          %v1608 = vcombine.high %v1600, %v1600
          %v1609 = vcombine.high %v1607, %v1607
          %v1611 = vunpack.c.l.s4 1966171168
          %v1612 = vunpack.c.0.s8 %v1611
          %v1613 = vlaneseq
          %v1614 = vshrl.u32 %v1613, 7
          %v1615 = vsub.s32 %v1612, %v1614
          %v1616 = vrot.slane %v1600, %v1615
          %v1618 = vunpack.c.l.s4 1966171168
          %v1619 = vunpack.c.0.s8 %v1618
          %v1620 = vlaneseq
          %v1621 = vshrl.u32 %v1620, 7
          %v1622 = vsub.s32 %v1619, %v1621
          %v1623 = vrot.slane %v1607, %v1622
          %v1625 = vunpack.c.l.s4 1966171168
          %v1626 = vunpack.c.0.s8 %v1625
          %v1627 = vlaneseq
          %v1628 = vshrl.u32 %v1627, 7
          %v1629 = vsub.s32 %v1626, %v1628
          %v1630 = vrot.slane %v1608, %v1629
          %v1632 = vunpack.c.l.s4 1966171168
          %v1633 = vunpack.c.0.s8 %v1632
          %v1634 = vlaneseq
          %v1635 = vshrl.u32 %v1634, 7
          %v1636 = vsub.s32 %v1633, %v1635
          %v1637 = vrot.slane %v1609, %v1636
          %v1638 = vcombine.high %v1616, %v1616
          %v1639 = vcombine.high %v1623, %v1623
          %v1640 = vcombine.high %v1630, %v1630
          %1648 = vst [vmem:[%s237 + $0x1] sm:$0x1] %v1616
          %1649 = vst [vmem:[%s237 + $0x5] sm:$0x1] %v1630
          %1650 = vst [vmem:[%s237 + $0x9] sm:$0x1] %v1638
          %1651 = vst [vmem:[%s237 + $0xd] sm:$0x1] %v1640
          %1652 = vst [vmem:[%s237 + $0x11] sm:$0x1] %v1623
          %1653 = vst [vmem:[%s237 + $0x15] sm:$0x1] %v1637
          %1654 = vst [vmem:[%s237 + $0x19] sm:$0x1] %v1639
          %v1655 = vld [vmem:[#allocation2 + $0x10] sm:$0x7f]
          %v1656 = vld [vmem:[#allocation2 + $0x17] ss:$0 sm:$0xff]
          %vm1657 = vcmp.gt.f32.partialorder %v1656, 0.5
          %v1658 = vsel %vm1657, 1, 0
          %vm1659 = vcmp.eq.s32.totalorder %v1658, 1
          %v1660 = vsel %vm1659, %v1655, %v1520
          %v1661 = vsub.f32 %v1660, %v1508
          %v1663 = vcombine.high %v1661, %v1661
          %v1665 = vunpack.c.l.s4 1966171168
          %v1666 = vunpack.c.0.s8 %v1665
          %v1667 = vlaneseq
          %v1668 = vshrl.u32 %v1667, 7
          %v1669 = vsub.s32 %v1666, %v1668
          %v1670 = vrot.slane %v1661, %v1669
          %v1672 = vunpack.c.l.s4 1966171168
          %v1673 = vunpack.c.0.s8 %v1672
          %v1674 = vlaneseq
          %v1675 = vshrl.u32 %v1674, 7
          %v1676 = vsub.s32 %v1673, %v1675
          %v1677 = vrot.slane %v1663, %v1676
          %v1678 = vcombine.high %v1670, %v1670
          %v1679 = vcombine.high %v1677, %v1677
          %v1681 = vunpack.c.l.s4 1966171168
          %v1682 = vunpack.c.0.s8 %v1681
          %v1683 = vlaneseq
          %v1684 = vshrl.u32 %v1683, 7
          %v1685 = vsub.s32 %v1682, %v1684
          %v1686 = vrot.slane %v1670, %v1685
          %v1688 = vunpack.c.l.s4 1966171168
          %v1689 = vunpack.c.0.s8 %v1688
          %v1690 = vlaneseq
          %v1691 = vshrl.u32 %v1690, 7
          %v1692 = vsub.s32 %v1689, %v1691
          %v1693 = vrot.slane %v1677, %v1692
          %v1695 = vunpack.c.l.s4 1966171168
          %v1696 = vunpack.c.0.s8 %v1695
          %v1697 = vlaneseq
          %v1698 = vshrl.u32 %v1697, 7
          %v1699 = vsub.s32 %v1696, %v1698
          %v1700 = vrot.slane %v1678, %v1699
          %v1702 = vunpack.c.l.s4 1966171168
          %v1703 = vunpack.c.0.s8 %v1702
          %v1704 = vlaneseq
          %v1705 = vshrl.u32 %v1704, 7
          %v1706 = vsub.s32 %v1703, %v1705
          %v1707 = vrot.slane %v1679, %v1706
          %v1708 = vcombine.high %v1686, %v1686
          %v1709 = vcombine.high %v1693, %v1693
          %v1710 = vcombine.high %v1700, %v1700
          %1718 = vst [vmem:[%s237 + $0x2] sm:$0x1] %v1686
          %1719 = vst [vmem:[%s237 + $0x6] sm:$0x1] %v1700
          %1720 = vst [vmem:[%s237 + $0xa] sm:$0x1] %v1708
          %1721 = vst [vmem:[%s237 + $0xe] sm:$0x1] %v1710
          %1722 = vst [vmem:[%s237 + $0x12] sm:$0x1] %v1693
          %1723 = vst [vmem:[%s237 + $0x16] sm:$0x1] %v1707
          %1724 = vst [vmem:[%s237 + $0x1a] sm:$0x1] %v1709
          %v1725 = vld [vmem:[#allocation2 + $0x18] sm:$0x7f]
          %v1726 = vld [vmem:[#allocation2 + $0x1f] ss:$0 sm:$0xff]
          %vm1727 = vcmp.gt.f32.partialorder %v1726, 0.5
          %v1728 = vsel %vm1727, 1, 0
          %vm1729 = vcmp.eq.s32.totalorder %v1728, 1
          %v1730 = vsel %vm1729, %v1725, %v1520
          %v1731 = vsub.f32 %v1730, %v1508
          %v1733 = vcombine.high %v1731, %v1731
          %v1735 = vunpack.c.l.s4 1966171168
          %v1736 = vunpack.c.0.s8 %v1735
          %v1737 = vlaneseq
          %v1738 = vshrl.u32 %v1737, 7
          %v1739 = vsub.s32 %v1736, %v1738
          %v1740 = vrot.slane %v1731, %v1739
          %v1742 = vunpack.c.l.s4 1966171168
          %v1743 = vunpack.c.0.s8 %v1742
          %v1744 = vlaneseq
          %v1745 = vshrl.u32 %v1744, 7
          %v1746 = vsub.s32 %v1743, %v1745
          %v1747 = vrot.slane %v1733, %v1746
          %v1748 = vcombine.high %v1740, %v1740
          %v1749 = vcombine.high %v1747, %v1747
          %v1751 = vunpack.c.l.s4 1966171168
          %v1752 = vunpack.c.0.s8 %v1751
          %v1753 = vlaneseq
          %v1754 = vshrl.u32 %v1753, 7
          %v1755 = vsub.s32 %v1752, %v1754
          %v1756 = vrot.slane %v1740, %v1755
          %v1758 = vunpack.c.l.s4 1966171168
          %v1759 = vunpack.c.0.s8 %v1758
          %v1760 = vlaneseq
          %v1761 = vshrl.u32 %v1760, 7
          %v1762 = vsub.s32 %v1759, %v1761
          %v1763 = vrot.slane %v1747, %v1762
          %v1765 = vunpack.c.l.s4 1966171168
          %v1766 = vunpack.c.0.s8 %v1765
          %v1767 = vlaneseq
          %v1768 = vshrl.u32 %v1767, 7
          %v1769 = vsub.s32 %v1766, %v1768
          %v1770 = vrot.slane %v1748, %v1769
          %v1772 = vunpack.c.l.s4 1966171168
          %v1773 = vunpack.c.0.s8 %v1772
          %v1774 = vlaneseq
          %v1775 = vshrl.u32 %v1774, 7
          %v1776 = vsub.s32 %v1773, %v1775
          %v1777 = vrot.slane %v1749, %v1776
          %v1778 = vcombine.high %v1756, %v1756
          %v1779 = vcombine.high %v1763, %v1763
          %v1780 = vcombine.high %v1770, %v1770
          %1788 = vst [vmem:[%s237 + $0x3] sm:$0x1] %v1756
          %1789 = vst [vmem:[%s237 + $0x7] sm:$0x1] %v1770
          %1790 = vst [vmem:[%s237 + $0xb] sm:$0x1] %v1778
          %1791 = vst [vmem:[%s237 + $0xf] sm:$0x1] %v1780
          %1792 = vst [vmem:[%s237 + $0x13] sm:$0x1] %v1763
          %1793 = vst [vmem:[%s237 + $0x17] sm:$0x1] %v1777
          %1794 = vst [vmem:[%s237 + $0x1b] sm:$0x1] %v1779
        $region40: #{tpu_custom_call.1} parent=31 // pred_fallthru
          _
        %s1795 = sand.u32 %s130, 1
        %s1796 = scalar_lea.sflag [#allocation6], %s1795
        %s1797 = sand.u32 %s130, 1
        %s1798 = smul.addr %s1797, 28
        %s1799 = scalar_lea.vmem [#allocation5], %s1798
        // Predicated region
        $region41: #{tpu_custom_call.1} parent=31 // pred_check
          %p1800 = pneg %p140
        $region42: #{tpu_custom_call.1} parent=31 // pred_check_branch
          %1802 = sbr.rel (%p1800) target = $region44
        $region43: #{tpu_custom_call.1} parent=31 // pred_region
          %s1804 = ssub.s32 448, 448
          %1805 = vsyncadd %s1796, %s1804
          %s1806 = smul.addr %s22, 7
          %s1807 = sadd.s32 %s23, %s1806
          %s1808 = smul.addr %s1807, 64
          %s1809 = scalar_lea.hbm %s3, %s1808
          %s1810 = sshll.u32 %s1799, 4
          %s1811 = int_to_ptr.vmem [resolvable:$true] %s1810
          %1816 = dma.vmem_to_hbm [thread:$0]  %s1811, 448, %s1809, %s1796, 64, 64, 4
        $region44: #{tpu_custom_call.1} parent=31 // pred_fallthru
          _
      $region32: #{tpu_custom_call.1} parent=5 // pred_fallthru
        _
      %p1817 = scmp.le.s32.totalorder 2, %s12
      // Predicated region
      $region45: #{tpu_custom_call.1} parent=5 // pred_check
        %p1818 = pneg %p1817
      $region46: #{tpu_custom_call.1} parent=5 // pred_check_branch
        %1820 = sbr.rel (%p1818) target = $region48
      $region47: #{tpu_custom_call.1} parent=5 // pred_region
        %s1821 = ssub.s32 %s12, 2
        // Predicated region
        $region49: #{tpu_custom_call.1} parent=47 // pred_check
          %p1822 = pneg %p146
        $region50: #{tpu_custom_call.1} parent=47 // pred_check_branch
          %1824 = sbr.rel (%p1822) target = $region52
        $region51: #{tpu_custom_call.1} parent=47 // pred_region
          %s1825 = sand.u32 %s131, 1
          %s1826 = scalar_lea.sflag [#allocation6], %s1825
          %s1827 = sand.u32 %s131, 1
          %s1828 = smul.addr %s1827, 28
          %s1829 = scalar_lea.vmem [#allocation5], %s1828
          %1830 = dma.done %s1826, 448
        $region52: #{tpu_custom_call.1} parent=47 // pred_fallthru
          _
      $region48: #{tpu_custom_call.1} parent=5 // pred_fallthru
        _
    $region6: #{tpu_custom_call.1} parent=1 // loop_footer
      %s16 = sadd.s32 1, %s12
    $region7: #{tpu_custom_call.1} parent=1 // loop_footer_branch
      %11 = sbr.rel target = $region3
    $region8: #{tpu_custom_call.1} parent=1 // loop_exit
      _
    %1831 = vsyncpa [#allocation6], 1
    %s1832 = scalar_lea.sflag [#allocation6], 1
    %1833 = vsyncpa %s1832, 1

</llo_original>
